<compile_context>
chip_gen: v7x
topology: tpu7x:2x2x1
jax: 0.10.0
libtpu: 0.0.40
codegen_flags: <defaults>
</compile_context>

<pallas_src>
import functools

import jax
import jax.numpy as jnp
from jax.experimental import pallas as pl
from jax.experimental.pallas import tpu as pltpu


def tconv_kernel(x_ref, w_ref, b_ref, o_ref, *, dilation):
    # x_ref: (TN, Wp, Cin) bf16   w_ref: (k, Cin, Cout) bf16
    # b_ref: (1, Cout)     f32    o_ref: (TN, Wout, Cout) out_dtype
    tn, wout, cout = o_ref.shape
    cin = x_ref.shape[-1]
    k = w_ref.shape[0]

    def tap(j):
        # Static sublane offset folded into the load (no shifted relayout copy
        # of the x block); reshape is layout-preserving since wout % 8 == 0.
        xj = x_ref[:, pl.ds(j * dilation, wout), :]
        return jnp.dot(xj.reshape(tn * wout, cin), w_ref[j],
                       preferred_element_type=jnp.float32)

    acc = tap(0)
    for j in range(1, k):          # k is small & static -> unrolled at trace time
        acc = acc + tap(j)

    y = acc + b_ref[...]           # broadcast (1, Cout) bias add in f32
    o_ref[...] = y.reshape(tn, wout, cout).astype(o_ref.dtype)


def make_tconv_params(key, in_c, out_c, k, init_type="random"):
    """Conv2d(in_c, out_c, (1, k)) params in PyTorch layout (out_c, in_c, 1, k)."""
    kw, kb = jax.random.split(key)
    if init_type == "fix":
        w = jnp.zeros((out_c, in_c, 1, k), jnp.float32)
        w = w.at[-1:].set(1.0 / k)
        b = jnp.zeros((out_c,), jnp.float32)
    else:
        # PyTorch Conv2d default: kaiming_uniform_(a=sqrt(5)) and bias bound
        # both reduce to U(-1/sqrt(fan_in), 1/sqrt(fan_in)), fan_in = in_c * k.
        bound = 1.0 / float(jnp.sqrt(in_c * k))
        w = jax.random.uniform(kw, (out_c, in_c, 1, k), jnp.float32, -bound, bound)
        b = jax.random.uniform(kb, (out_c,), jnp.float32, -bound, bound)
    return w, b


def tconv_forward(x_nchw, weight, bias, *, k, d,
                  out_dtype=jnp.bfloat16, return_nchw=True):
    """Pallas forward of Tconv: Conv2d(in_c, out_c, (1,k), dilation=(1,d), padding=(0,pad))."""
    bs, cin, H, W = x_nchw.shape
    cout = weight.shape[0]
    # Matches the PyTorch module's padding formula exactly (verbatim from source).
    pad = (k + (d - 1) * (d - 1) - 1) // 2
    wout = W + 2 * pad - d * (k - 1)
    assert wout > 0
    wpad = W + 2 * pad
    N = bs * H

    # ---- tiling: TN rows per grid step ----------------------------------
    out_bytes = jnp.dtype(out_dtype).itemsize
    # double-buffered in + out bytes per row of the block
    row_bytes = 2 * (wpad * cin * 2 + wout * cout * out_bytes)
    budget = 6 << 20                                   # conservative for v7x 64 MiB VMEM
    tn_max = max(8, (budget // row_bytes) // 8 * 8)
    tn_min = -(-max(8, -(-256 // wout)) // 8) * 8      # keep M = TN*Wout >= 256
    steps_target = 8                                   # >= 4 steps per TC on v7x
    tn_target = -(--(-N // steps_target) // -8) * 8 if False else -(-(-(-N // steps_target)) // 8) * 8
    tn_target = max(8, tn_target)
    tn = max(8, min(tn_max, max(tn_min, tn_target)))
    n_pad = -(-N // tn) * tn                           # pad N to a multiple of TN
    g = n_pad // tn

    # ---- glue: NCHW -> (Npad, Wp, Cin); transpose+pad+cast fuse into one copy
    xt = jnp.transpose(x_nchw, (0, 2, 3, 1)).reshape(N, W, cin)
    x_pad = jnp.pad(xt, ((0, n_pad - N), (pad, pad), (0, 0))).astype(jnp.bfloat16)

    # (out_c, in_c, 1, k) -> (k, in_c, out_c), bf16 for the MXU.
    w_t = jnp.transpose(weight[:, :, 0, :], (2, 1, 0)).astype(jnp.bfloat16)
    b_t = bias.reshape(1, cout).astype(jnp.float32)

    flops = 2 * n_pad * wout * cin * cout * k
    bytes_accessed = (n_pad * wpad * cin * 2            # x (bf16)
                      + k * cin * cout * 2 + cout * 4   # weights + bias
                      + n_pad * wout * cout * out_bytes)

    out = pl.pallas_call(
        functools.partial(tconv_kernel, dilation=d),
        out_shape=jax.ShapeDtypeStruct((n_pad, wout, cout), out_dtype),
        grid=(g,),
        in_specs=[
            pl.BlockSpec((tn, wpad, cin), lambda n: (n, 0, 0)),
            pl.BlockSpec((k, cin, cout), lambda n: (0, 0, 0)),
            pl.BlockSpec((1, cout), lambda n: (0, 0)),
        ],
        out_specs=pl.BlockSpec((tn, wout, cout), lambda n: (n, 0, 0)),
        compiler_params=pltpu.CompilerParams(
            dimension_semantics=("parallel",),
            vmem_limit_bytes=40 << 20),
        cost_estimate=pl.CostEstimate(flops=flops, transcendentals=0,
                                      bytes_accessed=bytes_accessed),
    )(x_pad, w_t, b_t)

    out = out[:N].reshape(bs, H, wout, cout)            # drop N-padding rows
    if return_nchw:
        # Kept only for PyTorch-semantics parity; prefer channels-last downstream.
        out = out.transpose(0, 3, 1, 2)                  # (bs, Cout, H, Wout)
    return out


def tconv_reference(x_nchw, weight, bias, *, k, d, cast_bf16=True):
    """Pure-JAX reference (f32 output) with the same bf16-input / f32-acc policy."""
    bs, cin, H, W = x_nchw.shape
    cout = weight.shape[0]
    pad = (k + (d - 1) * (d - 1) - 1) // 2
    wout = W + 2 * pad - d * (k - 1)
    xt = jnp.transpose(x_nchw, (0, 2, 3, 1))
    xp = jnp.pad(xt, ((0, 0), (0, 0), (pad, pad), (0, 0)))
    wt = jnp.transpose(weight[:, :, 0, :], (2, 1, 0))           # (k, Cin, Cout)
    if cast_bf16:
        xp = xp.astype(jnp.bfloat16)
        wt = wt.astype(jnp.bfloat16)
    acc = jnp.zeros((bs, H, wout, cout), jnp.float32)
    for j in range(k):
        acc = acc + jnp.einsum(
            "bhwc,cd->bhwd", xp[:, :, j * d:j * d + wout, :], wt[j],
            preferred_element_type=jnp.float32)
    y = acc + bias[None, None, None, :]
    return jnp.transpose(y, (0, 3, 1, 2))                        # (bs, Cout, H, Wout)


if __name__ == "__main__":
    # Tconv(in_c=64, out_c=128, k=3, d=1) on a (bs, in_c, joints, step) input.
    in_c, out_c, k, d = 64, 128, 3, 1
    bs, joints, step = 2, 16, 16

    key = jax.random.PRNGKey(0)
    k_x, k_p = jax.random.split(key)
    x = jax.random.normal(k_x, (bs, in_c, joints, step), jnp.float32)
    weight, bias = make_tconv_params(k_p, in_c, out_c, k)

    out = jax.block_until_ready(tconv_forward(x, weight, bias, k=k, d=d))

    pad = (k + (d - 1) * (d - 1) - 1) // 2
    wout = step + 2 * pad - d * (k - 1)
    assert out.shape == (bs, out_c, joints, wout), out.shape
    out_f32 = out.astype(jnp.float32)

    # Tight check vs a bf16-consistent reference (same matmul precision policy),
    # rounded to the kernel's output dtype.
    ref_bf = jax.block_until_ready(
        tconv_reference(x, weight, bias, k=k, d=d, cast_bf16=True))
    ref_bf_q = ref_bf.astype(out.dtype).astype(jnp.float32)
    assert jnp.allclose(out_f32, ref_bf_q, atol=2e-2, rtol=2e-2), \
        float(jnp.max(jnp.abs(out_f32 - ref_bf_q)))

    # Loose sanity check vs a full-f32 conv (bf16 MXU inputs / bf16 output differ slightly).
    ref32 = jax.block_until_ready(
        tconv_reference(x, weight, bias, k=k, d=d, cast_bf16=False))
    assert jnp.allclose(out_f32, ref32, atol=6e-2, rtol=6e-2), \
        float(jnp.max(jnp.abs(out_f32 - ref32)))

    print("KERNEL_OK")
</pallas_src>

<mosaic_0001>
module attributes {stable_mosaic.version = 11 : i64} {
  func.func @tconv_kernel(%arg0: i32, %arg1: memref<16x18x64xbf16, #tpu.memory_space<vmem>>, %arg2: memref<3x64x128xbf16, #tpu.memory_space<vmem>>, %arg3: memref<1x128xf32, #tpu.memory_space<vmem>>, %arg4: memref<16x16x128xbf16, #tpu.memory_space<vmem>>) attributes {dimension_semantics = [#tpu.dimension_semantics<parallel>], iteration_bounds = array<i64: 2>, scalar_prefetch = 0 : i64, scratch_operands = 0 : i64, tpu.core_type = #tpu.core_type<tc>, window_params = [{transform_indices = @transform_0, window_bounds = array<i64: 16, 18, 64>}, {pipeline_mode = #tpu.pipeline_mode<synchronous>, transform_indices = @transform_1, window_bounds = array<i64: 3, 64, 128>}, {pipeline_mode = #tpu.pipeline_mode<synchronous>, transform_indices = @transform_2, window_bounds = array<i64: 1, 128>}, {transform_indices = @transform_3, window_bounds = array<i64: 16, 16, 128>}]} {
    %c0 = arith.constant 0 : index
    %c0_0 = arith.constant 0 : index
    %c0_1 = arith.constant 0 : index
    %0 = vector.load %arg1[%c0, %c0_0, %c0_1] : memref<16x18x64xbf16, #tpu.memory_space<vmem>>, vector<16x16x64xbf16>
    %1 = vector.shape_cast %0 : vector<16x16x64xbf16> to vector<256x64xbf16>
    %c0_2 = arith.constant 0 : index
    %c0_3 = arith.constant 0 : index
    %c0_4 = arith.constant 0 : index
    %2 = vector.load %arg2[%c0_2, %c0_3, %c0_4] : memref<3x64x128xbf16, #tpu.memory_space<vmem>>, vector<1x64x128xbf16>
    %3 = vector.shape_cast %2 : vector<1x64x128xbf16> to vector<64x128xbf16>
    %cst = arith.constant dense<0.000000e+00> : vector<256x128xf32>
    %4 = tpu.matmul %1, %3, %cst {dimension_numbers = #tpu.dot_dimension_numbers<[1], [0], [0], [1], [0, 0, 1, 1], [], []>} : vector<256x64xbf16>, vector<64x128xbf16>, vector<256x128xf32> -> vector<256x128xf32>
    %c0_5 = arith.constant 0 : index
    %c1 = arith.constant 1 : index
    %c0_6 = arith.constant 0 : index
    %5 = vector.load %arg1[%c0_5, %c1, %c0_6] : memref<16x18x64xbf16, #tpu.memory_space<vmem>>, vector<16x16x64xbf16>
    %6 = vector.shape_cast %5 : vector<16x16x64xbf16> to vector<256x64xbf16>
    %c1_7 = arith.constant 1 : index
    %c0_8 = arith.constant 0 : index
    %c0_9 = arith.constant 0 : index
    %7 = vector.load %arg2[%c1_7, %c0_8, %c0_9] : memref<3x64x128xbf16, #tpu.memory_space<vmem>>, vector<1x64x128xbf16>
    %8 = vector.shape_cast %7 : vector<1x64x128xbf16> to vector<64x128xbf16>
    %cst_10 = arith.constant dense<0.000000e+00> : vector<256x128xf32>
    %9 = tpu.matmul %6, %8, %cst_10 {dimension_numbers = #tpu.dot_dimension_numbers<[1], [0], [0], [1], [0, 0, 1, 1], [], []>} : vector<256x64xbf16>, vector<64x128xbf16>, vector<256x128xf32> -> vector<256x128xf32>
    %10 = arith.addf %4, %9 : vector<256x128xf32>
    %c0_11 = arith.constant 0 : index
    %c2 = arith.constant 2 : index
    %c0_12 = arith.constant 0 : index
    %11 = vector.load %arg1[%c0_11, %c2, %c0_12] : memref<16x18x64xbf16, #tpu.memory_space<vmem>>, vector<16x16x64xbf16>
    %12 = vector.shape_cast %11 : vector<16x16x64xbf16> to vector<256x64xbf16>
    %c2_13 = arith.constant 2 : index
    %c0_14 = arith.constant 0 : index
    %c0_15 = arith.constant 0 : index
    %13 = vector.load %arg2[%c2_13, %c0_14, %c0_15] : memref<3x64x128xbf16, #tpu.memory_space<vmem>>, vector<1x64x128xbf16>
    %14 = vector.shape_cast %13 : vector<1x64x128xbf16> to vector<64x128xbf16>
    %cst_16 = arith.constant dense<0.000000e+00> : vector<256x128xf32>
    %15 = tpu.matmul %12, %14, %cst_16 {dimension_numbers = #tpu.dot_dimension_numbers<[1], [0], [0], [1], [0, 0, 1, 1], [], []>} : vector<256x64xbf16>, vector<64x128xbf16>, vector<256x128xf32> -> vector<256x128xf32>
    %16 = arith.addf %10, %15 : vector<256x128xf32>
    %c0_17 = arith.constant 0 : index
    %c0_18 = arith.constant 0 : index
    %17 = vector.load %arg3[%c0_17, %c0_18] : memref<1x128xf32, #tpu.memory_space<vmem>>, vector<1x128xf32>
    %18 = vector.broadcast %17 : vector<1x128xf32> to vector<256x128xf32>
    %19 = arith.addf %16, %18 : vector<256x128xf32>
    %20 = vector.shape_cast %19 : vector<256x128xf32> to vector<16x16x128xf32>
    %21 = arith.truncf %20 : vector<16x16x128xf32> to vector<16x16x128xbf16>
    %c0_19 = arith.constant 0 : index
    %c0_20 = arith.constant 0 : index
    %c0_21 = arith.constant 0 : index
    %22 = vector.load %arg4[%c0_19, %c0_20, %c0_21] : memref<16x16x128xbf16, #tpu.memory_space<vmem>>, vector<16x16x128xbf16>
    tpu.vector_store %arg4[%c0_19, %c0_20, %c0_21], %21 {strides = array<i32>} : memref<16x16x128xbf16, #tpu.memory_space<vmem>>, vector<16x16x128xbf16>,
    return
  }
  func.func @transform_0(%arg0: i32) -> (i32, i32, i32) {
    %c0_i32 = arith.constant 0 : i32
    %c0_i32_0 = arith.constant 0 : i32
    %c0_i32_1 = arith.constant 0 : i32
    return %arg0, %c0_i32, %c0_i32_0 : i32, i32, i32
  }
  func.func @transform_1(%arg0: i32) -> (i32, i32, i32) {
    %c0_i32 = arith.constant 0 : i32
    %c0_i32_0 = arith.constant 0 : i32
    %c0_i32_1 = arith.constant 0 : i32
    %c0_i32_2 = arith.constant 0 : i32
    return %c0_i32, %c0_i32_0, %c0_i32_1 : i32, i32, i32
  }
  func.func @transform_2(%arg0: i32) -> (i32, i32) {
    %c0_i32 = arith.constant 0 : i32
    %c0_i32_0 = arith.constant 0 : i32
    %c0_i32_1 = arith.constant 0 : i32
    return %c0_i32, %c0_i32_0 : i32, i32
  }
  func.func @transform_3(%arg0: i32) -> (i32, i32, i32) {
    %c0_i32 = arith.constant 0 : i32
    %c0_i32_0 = arith.constant 0 : i32
    %c0_i32_1 = arith.constant 0 : i32
    return %arg0, %c0_i32, %c0_i32_0 : i32, i32, i32
  }
}

</mosaic_0001>

<llo_original>
// kernel: tpu_custom_call.1
$region0: #{tpu_custom_call.1}
  #allocation0 [shape = 'u32[]', space=smem, size = 0x4, offset = 0x4, fixed_abs, tag = 'smem constant byte address 0x4 - core index']
  #allocation1 [shape = 'u32[144,128]{1,0:T(1,128)}', space=vmem, size = 0x12000, scoped, tag = 'internal scratch']
  %s0 = inlined_call_operand.vmem [shape: bf16[32,18,64], index: 0, kind: input, shape index: {}]
  %s1 = inlined_call_operand.vmem [shape: bf16[3,64,128], index: 1, kind: input, shape index: {}]
  %s2 = inlined_call_operand.vmem [shape: f32[1,128], index: 2, kind: input, shape index: {}]
  %s3 = inlined_call_operand.hbm [shape: bf16[32,16,128], index: 3, kind: output, shape index: {}]
  %s4 = sld [smem:[#allocation0]]
  $region45: #{tpu_custom_call.1} parent=0
    _
  %s6 = ssub.s32 1, %s4
  %s7 = scalar_select 0, %s6, %s4
  $region1: #{tpu_custom_call.1} parent=0
    #allocation2 [shape = 'u8[131072]{0}', space=vmem, size = 0x20000, scoped, tag = 'output window, operand 0']
    #allocation3 [shape = 's32[2]{0}', space=sflag, size = 0x8, scoped, tag = 'scoped memory for tpu_custom_call.1']
    %8 = vsyncpa [#allocation3], 0
    %s9 = scalar_lea.sflag [#allocation3], 1
    %10 = vsyncpa %s9, 0
    loop: start=0, step=1, limit=4
    $region2: #{tpu_custom_call.1} parent=1 // loop_pre_header
      _
    $region3: #{tpu_custom_call.1} parent=1 // loop_header
      %s12 = sphi 0, %s16
      %p13 = scmp.ge.s32.totalorder %s12, 4
      %s22 = sphi 0, %s24
      %s25 = sphi 0, %s22
      %s26 = sphi 0, %s25
      %s42 = sphi 0, %s26
      %s46 = sphi 0, %s46
      %s48 = sphi 0, %s46
      %s49 = sphi 0, %s48
      %s63 = sphi 0, %s49
      %s67 = sphi 0, %s67
      %s69 = sphi 0, %s67
      %s70 = sphi 0, %s69
      %s84 = sphi 0, %s70
      %s90 = sphi 0, %s92
      %s93 = sphi 0, %s90
      %s94 = sphi 0, %s93
      %s110 = sphi 0, %s94
    $region4: #{tpu_custom_call.1} parent=1 // loop_header_branch
      %15 = sbr.rel (%p13) target = $region8
    $region5: #{tpu_custom_call.1} parent=1 // loop_body
      %s17 = ssub.s32 %s12, 1
      %s18 = ssub.s32 %s12, 2
      %s19 = sadd.s32 %s12, 1
      %s20 = ssub.s32 %s12, %s19
      %p21 = scmp.eq.s32.totalorder %s20, 0
      %s23 = sadd.s32 %s22, 1
      %s24 = scalar_select %p21, %s22, %s23
      %p27 = pneg %p21
      %p28 = scmp.eq.s32.totalorder %s12, 1
      %p29 = por %p27, %p28
      %p30 = scmp.ne.s32.totalorder %s22, %s25
      %p31 = scmp.eq.s32.totalorder %s12, 0
      %p32 = por %p30, %p31
      %p33 = scmp.ne.s32.totalorder %s22, %s25
      %p34 = scmp.eq.s32.totalorder %s17, 1
      %p35 = por %p33, %p34
      %p36 = scmp.ne.s32.totalorder %s25, %s26
      %p37 = scmp.eq.s32.totalorder %s17, 0
      %p38 = por %p36, %p37
      %p39 = scmp.ne.s32.totalorder %s25, %s26
      %p40 = scmp.eq.s32.totalorder %s18, 1
      %p41 = por %p39, %p40
      %p43 = scmp.ne.s32.totalorder %s26, %s42
      %p44 = scmp.eq.s32.totalorder %s18, 0
      %p45 = por %p43, %p44
      %s47 = sadd.s32 %s46, 1
      %p50 = scmp.eq.s32.totalorder %s12, 1
      %p51 = scmp.ne.s32.totalorder %s46, %s48
      %p52 = scmp.eq.s32.totalorder %s12, 0
      %p53 = por %p51, %p52
      %p54 = scmp.ne.s32.totalorder %s46, %s48
      %p55 = scmp.eq.s32.totalorder %s17, 1
      %p56 = por %p54, %p55
      %p57 = scmp.ne.s32.totalorder %s48, %s49
      %p58 = scmp.eq.s32.totalorder %s17, 0
      %p59 = por %p57, %p58
      %p60 = scmp.ne.s32.totalorder %s48, %s49
      %p61 = scmp.eq.s32.totalorder %s18, 1
      %p62 = por %p60, %p61
      %p64 = scmp.ne.s32.totalorder %s49, %s63
      %p65 = scmp.eq.s32.totalorder %s18, 0
      %p66 = por %p64, %p65
      %s68 = sadd.s32 %s67, 1
      %p71 = scmp.eq.s32.totalorder %s12, 1
      %p72 = scmp.ne.s32.totalorder %s67, %s69
      %p73 = scmp.eq.s32.totalorder %s12, 0
      %p74 = por %p72, %p73
      %p75 = scmp.ne.s32.totalorder %s67, %s69
      %p76 = scmp.eq.s32.totalorder %s17, 1
      %p77 = por %p75, %p76
      %p78 = scmp.ne.s32.totalorder %s69, %s70
      %p79 = scmp.eq.s32.totalorder %s17, 0
      %p80 = por %p78, %p79
      %p81 = scmp.ne.s32.totalorder %s69, %s70
      %p82 = scmp.eq.s32.totalorder %s18, 1
      %p83 = por %p81, %p82
      %p85 = scmp.ne.s32.totalorder %s70, %s84
      %p86 = scmp.eq.s32.totalorder %s18, 0
      %p87 = por %p85, %p86
      %s88 = ssub.s32 %s12, %s19
      %p89 = scmp.eq.s32.totalorder %s88, 0
      %s91 = sadd.s32 %s90, 1
      %s92 = scalar_select %p89, %s90, %s91
      %p95 = pneg %p89
      %p96 = scmp.eq.s32.totalorder %s12, 1
      %p97 = por %p95, %p96
      %p98 = scmp.ne.s32.totalorder %s90, %s93
      %p99 = scmp.eq.s32.totalorder %s12, 0
      %p100 = por %p98, %p99
      %p101 = scmp.ne.s32.totalorder %s90, %s93
      %p102 = scmp.eq.s32.totalorder %s17, 1
      %p103 = por %p101, %p102
      %p104 = scmp.ne.s32.totalorder %s93, %s94
      %p105 = scmp.eq.s32.totalorder %s17, 0
      %p106 = por %p104, %p105
      %p107 = scmp.ne.s32.totalorder %s93, %s94
      %p108 = scmp.eq.s32.totalorder %s18, 1
      %p109 = por %p107, %p108
      %p111 = scmp.ne.s32.totalorder %s94, %s110
      %p112 = scmp.eq.s32.totalorder %s18, 0
      %p113 = por %p111, %p112
      %p114 = scmp.le.s32.totalorder 1, %s12
      %p115 = scmp.lt.s32.totalorder %s12, 3
      %p116 = pnand %p114, %p115
      %p117 = pneg %p116
      // Predicated region
      $region9: #{tpu_custom_call.1} parent=5 // pred_check
        _
      $region10: #{tpu_custom_call.1} parent=5 // pred_check_branch
        %119 = sbr.rel (%p116) target = $region12
      $region11: #{tpu_custom_call.1} parent=5 // pred_region
        %s120 = ssub.s32 %s12, 1
        // Predicated region
        $region13: #{tpu_custom_call.1} parent=11 // pred_check
          %p121 = pneg %p59
        $region14: #{tpu_custom_call.1} parent=11 // pred_check_branch
          %123 = sbr.rel (%p121) target = $region16
        $region15: #{tpu_custom_call.1} parent=11 // pred_region
          _
        $region16: #{tpu_custom_call.1} parent=11 // pred_fallthru
          _
        // Predicated region
        $region17: #{tpu_custom_call.1} parent=11 // pred_check
          %p124 = pneg %p80
        $region18: #{tpu_custom_call.1} parent=11 // pred_check_branch
          %126 = sbr.rel (%p124) target = $region20
        $region19: #{tpu_custom_call.1} parent=11 // pred_region
          _
        $region20: #{tpu_custom_call.1} parent=11 // pred_fallthru
          _
      $region12: #{tpu_custom_call.1} parent=5 // pred_fallthru
        _
      %p127 = scmp.lt.s32.totalorder %s12, 2
      // Predicated region
      $region21: #{tpu_custom_call.1} parent=5 // pred_check
        %p128 = pneg %p127
      $region22: #{tpu_custom_call.1} parent=5 // pred_check_branch
        %130 = sbr.rel (%p128) target = $region24
      $region23: #{tpu_custom_call.1} parent=5 // pred_region
        // Predicated region
        $region25: #{tpu_custom_call.1} parent=23 // pred_check
          %p131 = pneg %p32
        $region26: #{tpu_custom_call.1} parent=23 // pred_check_branch
          %133 = sbr.rel (%p131) target = $region28
        $region27: #{tpu_custom_call.1} parent=23 // pred_region
          %s134 = smul.u32 16, %s12
          %p135 = scmp.lt.s32.totalorder %s134, 31
          %s136 = scalar_select %p135, %s134, 31
          %s137 = smul.addr %s136, 3
          %s138 = smul.addr %s137, 4
          %s139 = scalar_lea.vmem %s0, %s138
          %s140 = smul.u32 16, %s12
        $region28: #{tpu_custom_call.1} parent=23 // pred_fallthru
          _
      $region24: #{tpu_custom_call.1} parent=5 // pred_fallthru
        _
      %p141 = scmp.le.s32.totalorder 1, %s12
      %p142 = scmp.lt.s32.totalorder %s12, 3
      %p143 = pnand %p141, %p142
      %p144 = pneg %p143
      // Predicated region
      $region29: #{tpu_custom_call.1} parent=5 // pred_check
        _
      $region30: #{tpu_custom_call.1} parent=5 // pred_check_branch
        %146 = sbr.rel (%p143) target = $region32
      $region31: #{tpu_custom_call.1} parent=5 // pred_region
        %s147 = ssub.s32 %s12, 1
        %s148 = smul.u32 16, %s17
        %p149 = scmp.lt.s32.totalorder %s148, 31
        %s150 = scalar_select %p149, %s148, 31
        %s151 = smul.addr %s150, 3
        %s152 = smul.addr %s151, 4
        %s153 = scalar_lea.vmem %s0, %s152
        %p154 = pneg %p38
        %p155 = pneg %p35
        %p156 = pneg %p59
        %p157 = pneg %p56
        %p158 = pneg %p80
        %p159 = pneg %p77
        %p160 = pneg %p106
        %p161 = pneg %p103
        %s162 = sand.u32 %s93, 1
        %s163 = scalar_lea.sflag [#allocation3], %s162
        %s164 = sand.u32 %s93, 1
        %s165 = smul.addr %s164, 128
        %s166 = scalar_lea.vmem [#allocation2], %s165
        %s167 = smul.u32 16, %s17
        %p168 = scmp.lt.s32.totalorder %s167, 31
        %s169 = scalar_select %p168, %s167, 31
        %s170 = smul.addr %s169, 3
        %s171 = smul.addr %s170, 4
        %s172 = scalar_lea.vmem %s0, %s171
        %s173 = smul.u32 16, %s17
        %s174 = smul.u32 16, %s17
        %v176 = vld [vmem:[%s172] sm:$0xf]
        %v177 = vld [vmem:[%s172 + $0x4] sm:$0xf]
        %v178 = vld [vmem:[%s172 + $0xc] sm:$0xf]
        %v179 = vld [vmem:[%s172 + $0x10] sm:$0xf]
        %v180 = vld [vmem:[%s172 + $0x18] sm:$0xf]
        %v181 = vld [vmem:[%s172 + $0x1c] sm:$0xf]
        %v182 = vld [vmem:[%s172 + $0x24] sm:$0xf]
        %v183 = vld [vmem:[%s172 + $0x28] sm:$0xf]
        %v184 = vld [vmem:[%s172 + $0x30] sm:$0xf]
        %v185 = vld [vmem:[%s172 + $0x34] sm:$0xf]
        %v186 = vld [vmem:[%s172 + $0x3c] sm:$0xf]
        %v187 = vld [vmem:[%s172 + $0x40] sm:$0xf]
        %v188 = vld [vmem:[%s172 + $0x48] sm:$0xf]
        %v189 = vld [vmem:[%s172 + $0x4c] sm:$0xf]
        %v190 = vld [vmem:[%s172 + $0x54] sm:$0xf]
        %v191 = vld [vmem:[%s172 + $0x58] sm:$0xf]
        %v192 = vld [vmem:[%s172 + $0x60] sm:$0xf]
        %v193 = vld [vmem:[%s172 + $0x64] sm:$0xf]
        %v194 = vld [vmem:[%s172 + $0x6c] sm:$0xf]
        %v195 = vld [vmem:[%s172 + $0x70] sm:$0xf]
        %v196 = vld [vmem:[%s172 + $0x78] sm:$0xf]
        %v197 = vld [vmem:[%s172 + $0x7c] sm:$0xf]
        %v198 = vld [vmem:[%s172 + $0x84] sm:$0xf]
        %v199 = vld [vmem:[%s172 + $0x88] sm:$0xf]
        %v200 = vld [vmem:[%s172 + $0x90] sm:$0xf]
        %v201 = vld [vmem:[%s172 + $0x94] sm:$0xf]
        %v202 = vld [vmem:[%s172 + $0x9c] sm:$0xf]
        %v203 = vld [vmem:[%s172 + $0xa0] sm:$0xf]
        %v204 = vld [vmem:[%s172 + $0xa8] sm:$0xf]
        %v205 = vld [vmem:[%s172 + $0xac] sm:$0xf]
        %v206 = vld [vmem:[%s172 + $0xb4] sm:$0xf]
        %v207 = vld [vmem:[%s172 + $0xb8] sm:$0xf]
        %v208 = vld [vmem:[%s1] sm:$0xf]
        %v209 = vld [vmem:[%s1 + $0x4] sm:$0xf]
        %v210 = vld [vmem:[%s1 + $0x8] sm:$0xf]
        %v211 = vld [vmem:[%s1 + $0xc] sm:$0xf]
        %v212 = vld [vmem:[%s1 + $0x10] sm:$0xf]
        %v213 = vld [vmem:[%s1 + $0x14] sm:$0xf]
        %v214 = vld [vmem:[%s1 + $0x18] sm:$0xf]
        %v215 = vld [vmem:[%s1 + $0x1c] sm:$0xf]
        %v216 = vld [vmem:[%s172 + $0x8] sm:$0x1]
        %v217 = vld [vmem:[%s172 + $0x14] sm:$0x1]
        %v218 = vld [vmem:[%s172 + $0x20] sm:$0x1]
        %v219 = vld [vmem:[%s172 + $0x2c] sm:$0x1]
        %v220 = vld [vmem:[%s172 + $0x38] sm:$0x1]
        %v221 = vld [vmem:[%s172 + $0x44] sm:$0x1]
        %v222 = vld [vmem:[%s172 + $0x50] sm:$0x1]
        %v223 = vld [vmem:[%s172 + $0x5c] sm:$0x1]
        %v224 = vld [vmem:[%s172 + $0x68] sm:$0x1]
        %v225 = vld [vmem:[%s172 + $0x74] sm:$0x1]
        %v226 = vld [vmem:[%s172 + $0x80] sm:$0x1]
        %v227 = vld [vmem:[%s172 + $0x8c] sm:$0x1]
        %v228 = vld [vmem:[%s172 + $0x98] sm:$0x1]
        %v229 = vld [vmem:[%s172 + $0xa4] sm:$0x1]
        %v230 = vld [vmem:[%s172 + $0xb0] sm:$0x1]
        %v231 = vld [vmem:[%s172 + $0xbc] sm:$0x1]
        %vm232 = vsmask.f32 3328
        %vm233 = vsmask.f32 7440
        %vm234 = vmor %vm232, %vm233
        %v236 = vshrl.u32 %v176, 16
        %v238 = vrot.slane %v236, 4
        %v239 = vshll.u32 %v176, 16
        %v241 = vrot.slane %v239, 5
        %v242 = vor.u32 %v238, %v241
        %v243 = vrot.slane %v242, 4
        %v245 = vshll.u32 %v177, 16
        %v247 = vrot.slane %v245, 5
        %v248 = vsel %vm234, %v243, %v247
        %v249 = vshrl.u32 %v177, 16
        %v251 = vrot.slane %v249, 4
        %v252 = vor.u32 %v251, %v247
        %v253 = vrot.slane %v252, 4
        %v255 = vshll.u32 %v216, 16
        %v257 = vrot.slane %v255, 5
        %v258 = vsel %vm234, %v253, %v257
        %v260 = vshrl.u32 %v178, 16
        %v262 = vrot.slane %v260, 4
        %v263 = vshll.u32 %v178, 16
        %v265 = vrot.slane %v263, 5
        %v266 = vor.u32 %v262, %v265
        %v267 = vrot.slane %v266, 4
        %v269 = vshll.u32 %v179, 16
        %v271 = vrot.slane %v269, 5
        %v272 = vsel %vm234, %v267, %v271
        %v273 = vshrl.u32 %v179, 16
        %v275 = vrot.slane %v273, 4
        %v276 = vor.u32 %v275, %v271
        %v277 = vrot.slane %v276, 4
        %v279 = vshll.u32 %v217, 16
        %v281 = vrot.slane %v279, 5
        %v282 = vsel %vm234, %v277, %v281
        %v284 = vshrl.u32 %v180, 16
        %v286 = vrot.slane %v284, 4
        %v287 = vshll.u32 %v180, 16
        %v289 = vrot.slane %v287, 5
        %v290 = vor.u32 %v286, %v289
        %v291 = vrot.slane %v290, 4
        %v293 = vshll.u32 %v181, 16
        %v295 = vrot.slane %v293, 5
        %v296 = vsel %vm234, %v291, %v295
        %v297 = vshrl.u32 %v181, 16
        %v299 = vrot.slane %v297, 4
        %v300 = vor.u32 %v299, %v295
        %v301 = vrot.slane %v300, 4
        %v303 = vshll.u32 %v218, 16
        %v305 = vrot.slane %v303, 5
        %v306 = vsel %vm234, %v301, %v305
        %v308 = vshrl.u32 %v182, 16
        %v310 = vrot.slane %v308, 4
        %v311 = vshll.u32 %v182, 16
        %v313 = vrot.slane %v311, 5
        %v314 = vor.u32 %v310, %v313
        %v315 = vrot.slane %v314, 4
        %v317 = vshll.u32 %v183, 16
        %v319 = vrot.slane %v317, 5
        %v320 = vsel %vm234, %v315, %v319
        %v321 = vshrl.u32 %v183, 16
        %v323 = vrot.slane %v321, 4
        %v324 = vor.u32 %v323, %v319
        %v325 = vrot.slane %v324, 4
        %v327 = vshll.u32 %v219, 16
        %v329 = vrot.slane %v327, 5
        %v330 = vsel %vm234, %v325, %v329
        %v332 = vshrl.u32 %v184, 16
        %v334 = vrot.slane %v332, 4
        %v335 = vshll.u32 %v184, 16
        %v337 = vrot.slane %v335, 5
        %v338 = vor.u32 %v334, %v337
        %v339 = vrot.slane %v338, 4
        %v341 = vshll.u32 %v185, 16
        %v343 = vrot.slane %v341, 5
        %v344 = vsel %vm234, %v339, %v343
        %v345 = vshrl.u32 %v185, 16
        %v347 = vrot.slane %v345, 4
        %v348 = vor.u32 %v347, %v343
        %v349 = vrot.slane %v348, 4
        %v351 = vshll.u32 %v220, 16
        %v353 = vrot.slane %v351, 5
        %v354 = vsel %vm234, %v349, %v353
        %v356 = vshrl.u32 %v186, 16
        %v358 = vrot.slane %v356, 4
        %v359 = vshll.u32 %v186, 16
        %v361 = vrot.slane %v359, 5
        %v362 = vor.u32 %v358, %v361
        %v363 = vrot.slane %v362, 4
        %v365 = vshll.u32 %v187, 16
        %v367 = vrot.slane %v365, 5
        %v368 = vsel %vm234, %v363, %v367
        %v369 = vshrl.u32 %v187, 16
        %v371 = vrot.slane %v369, 4
        %v372 = vor.u32 %v371, %v367
        %v373 = vrot.slane %v372, 4
        %v375 = vshll.u32 %v221, 16
        %v377 = vrot.slane %v375, 5
        %v378 = vsel %vm234, %v373, %v377
        %v380 = vshrl.u32 %v188, 16
        %v382 = vrot.slane %v380, 4
        %v383 = vshll.u32 %v188, 16
        %v385 = vrot.slane %v383, 5
        %v386 = vor.u32 %v382, %v385
        %v387 = vrot.slane %v386, 4
        %v389 = vshll.u32 %v189, 16
        %v391 = vrot.slane %v389, 5
        %v392 = vsel %vm234, %v387, %v391
        %v393 = vshrl.u32 %v189, 16
        %v395 = vrot.slane %v393, 4
        %v396 = vor.u32 %v395, %v391
        %v397 = vrot.slane %v396, 4
        %v399 = vshll.u32 %v222, 16
        %v401 = vrot.slane %v399, 5
        %v402 = vsel %vm234, %v397, %v401
        %v404 = vshrl.u32 %v190, 16
        %v406 = vrot.slane %v404, 4
        %v407 = vshll.u32 %v190, 16
        %v409 = vrot.slane %v407, 5
        %v410 = vor.u32 %v406, %v409
        %v411 = vrot.slane %v410, 4
        %v413 = vshll.u32 %v191, 16
        %v415 = vrot.slane %v413, 5
        %v416 = vsel %vm234, %v411, %v415
        %v417 = vshrl.u32 %v191, 16
        %v419 = vrot.slane %v417, 4
        %v420 = vor.u32 %v419, %v415
        %v421 = vrot.slane %v420, 4
        %v423 = vshll.u32 %v223, 16
        %v425 = vrot.slane %v423, 5
        %v426 = vsel %vm234, %v421, %v425
        %v428 = vshrl.u32 %v192, 16
        %v430 = vrot.slane %v428, 4
        %v431 = vshll.u32 %v192, 16
        %v433 = vrot.slane %v431, 5
        %v434 = vor.u32 %v430, %v433
        %v435 = vrot.slane %v434, 4
        %v437 = vshll.u32 %v193, 16
        %v439 = vrot.slane %v437, 5
        %v440 = vsel %vm234, %v435, %v439
        %v441 = vshrl.u32 %v193, 16
        %v443 = vrot.slane %v441, 4
        %v444 = vor.u32 %v443, %v439
        %v445 = vrot.slane %v444, 4
        %v447 = vshll.u32 %v224, 16
        %v449 = vrot.slane %v447, 5
        %v450 = vsel %vm234, %v445, %v449
        %v452 = vshrl.u32 %v194, 16
        %v454 = vrot.slane %v452, 4
        %v455 = vshll.u32 %v194, 16
        %v457 = vrot.slane %v455, 5
        %v458 = vor.u32 %v454, %v457
        %v459 = vrot.slane %v458, 4
        %v461 = vshll.u32 %v195, 16
        %v463 = vrot.slane %v461, 5
        %v464 = vsel %vm234, %v459, %v463
        %v465 = vshrl.u32 %v195, 16
        %v467 = vrot.slane %v465, 4
        %v468 = vor.u32 %v467, %v463
        %v469 = vrot.slane %v468, 4
        %v471 = vshll.u32 %v225, 16
        %v473 = vrot.slane %v471, 5
        %v474 = vsel %vm234, %v469, %v473
        %v476 = vshrl.u32 %v196, 16
        %v478 = vrot.slane %v476, 4
        %v479 = vshll.u32 %v196, 16
        %v481 = vrot.slane %v479, 5
        %v482 = vor.u32 %v478, %v481
        %v483 = vrot.slane %v482, 4
        %v485 = vshll.u32 %v197, 16
        %v487 = vrot.slane %v485, 5
        %v488 = vsel %vm234, %v483, %v487
        %v489 = vshrl.u32 %v197, 16
        %v491 = vrot.slane %v489, 4
        %v492 = vor.u32 %v491, %v487
        %v493 = vrot.slane %v492, 4
        %v495 = vshll.u32 %v226, 16
        %v497 = vrot.slane %v495, 5
        %v498 = vsel %vm234, %v493, %v497
        %v500 = vshrl.u32 %v198, 16
        %v502 = vrot.slane %v500, 4
        %v503 = vshll.u32 %v198, 16
        %v505 = vrot.slane %v503, 5
        %v506 = vor.u32 %v502, %v505
        %v507 = vrot.slane %v506, 4
        %v509 = vshll.u32 %v199, 16
        %v511 = vrot.slane %v509, 5
        %v512 = vsel %vm234, %v507, %v511
        %v513 = vshrl.u32 %v199, 16
        %v515 = vrot.slane %v513, 4
        %v516 = vor.u32 %v515, %v511
        %v517 = vrot.slane %v516, 4
        %v519 = vshll.u32 %v227, 16
        %v521 = vrot.slane %v519, 5
        %v522 = vsel %vm234, %v517, %v521
        %v524 = vshrl.u32 %v200, 16
        %v526 = vrot.slane %v524, 4
        %v527 = vshll.u32 %v200, 16
        %v529 = vrot.slane %v527, 5
        %v530 = vor.u32 %v526, %v529
        %v531 = vrot.slane %v530, 4
        %v533 = vshll.u32 %v201, 16
        %v535 = vrot.slane %v533, 5
        %v536 = vsel %vm234, %v531, %v535
        %v537 = vshrl.u32 %v201, 16
        %v539 = vrot.slane %v537, 4
        %v540 = vor.u32 %v539, %v535
        %v541 = vrot.slane %v540, 4
        %v543 = vshll.u32 %v228, 16
        %v545 = vrot.slane %v543, 5
        %v546 = vsel %vm234, %v541, %v545
        %v548 = vshrl.u32 %v202, 16
        %v550 = vrot.slane %v548, 4
        %v551 = vshll.u32 %v202, 16
        %v553 = vrot.slane %v551, 5
        %v554 = vor.u32 %v550, %v553
        %v555 = vrot.slane %v554, 4
        %v557 = vshll.u32 %v203, 16
        %v559 = vrot.slane %v557, 5
        %v560 = vsel %vm234, %v555, %v559
        %v561 = vshrl.u32 %v203, 16
        %v563 = vrot.slane %v561, 4
        %v564 = vor.u32 %v563, %v559
        %v565 = vrot.slane %v564, 4
        %v567 = vshll.u32 %v229, 16
        %v569 = vrot.slane %v567, 5
        %v570 = vsel %vm234, %v565, %v569
        %v572 = vshrl.u32 %v204, 16
        %v574 = vrot.slane %v572, 4
        %v575 = vshll.u32 %v204, 16
        %v577 = vrot.slane %v575, 5
        %v578 = vor.u32 %v574, %v577
        %v579 = vrot.slane %v578, 4
        %v581 = vshll.u32 %v205, 16
        %v583 = vrot.slane %v581, 5
        %v584 = vsel %vm234, %v579, %v583
        %v585 = vshrl.u32 %v205, 16
        %v587 = vrot.slane %v585, 4
        %v588 = vor.u32 %v587, %v583
        %v589 = vrot.slane %v588, 4
        %v591 = vshll.u32 %v230, 16
        %v593 = vrot.slane %v591, 5
        %v594 = vsel %vm234, %v589, %v593
        %v596 = vshrl.u32 %v206, 16
        %v598 = vrot.slane %v596, 4
        %v599 = vshll.u32 %v206, 16
        %v601 = vrot.slane %v599, 5
        %v602 = vor.u32 %v598, %v601
        %v603 = vrot.slane %v602, 4
        %v605 = vshll.u32 %v207, 16
        %v607 = vrot.slane %v605, 5
        %v608 = vsel %vm234, %v603, %v607
        %v609 = vshrl.u32 %v207, 16
        %v611 = vrot.slane %v609, 4
        %v612 = vor.u32 %v611, %v607
        %v613 = vrot.slane %v612, 4
        %v615 = vshll.u32 %v231, 16
        %v617 = vrot.slane %v615, 5
        %v618 = vsel %vm234, %v613, %v617
        %s619 = scalar_lea.vmem %s1, 32
        %v620 = vld [vmem:[%s619] sm:$0xf]
        %v621 = vld [vmem:[%s619 + $0x4] sm:$0xf]
        %v622 = vld [vmem:[%s619 + $0x8] sm:$0xf]
        %v623 = vld [vmem:[%s619 + $0xc] sm:$0xf]
        %v624 = vld [vmem:[%s619 + $0x10] sm:$0xf]
        %v625 = vld [vmem:[%s619 + $0x14] sm:$0xf]
        %v626 = vld [vmem:[%s619 + $0x18] sm:$0xf]
        %v627 = vld [vmem:[%s619 + $0x1c] sm:$0xf]
        %v628 = vunpack.c.l.b16 %v248
        %v629 = vunpack.c.l.b16 %v258
        %v630 = vunpack.c.l.b16 %v272
        %v631 = vunpack.c.l.b16 %v282
        %v632 = vunpack.c.l.b16 %v296
        %v633 = vunpack.c.l.b16 %v306
        %v634 = vunpack.c.l.b16 %v320
        %v635 = vunpack.c.l.b16 %v330
        %v636 = vunpack.c.l.b16 %v344
        %v637 = vunpack.c.l.b16 %v354
        %v638 = vunpack.c.l.b16 %v368
        %v639 = vunpack.c.l.b16 %v378
        %v640 = vunpack.c.l.b16 %v392
        %v641 = vunpack.c.l.b16 %v402
        %v642 = vunpack.c.l.b16 %v416
        %v643 = vunpack.c.l.b16 %v426
        %v644 = vunpack.c.l.b16 %v440
        %v645 = vunpack.c.l.b16 %v450
        %v646 = vunpack.c.l.b16 %v464
        %v647 = vunpack.c.l.b16 %v474
        %v648 = vunpack.c.l.b16 %v488
        %v649 = vunpack.c.l.b16 %v498
        %v650 = vunpack.c.l.b16 %v512
        %v651 = vunpack.c.l.b16 %v522
        %v652 = vunpack.c.l.b16 %v536
        %v653 = vunpack.c.l.b16 %v546
        %v654 = vunpack.c.l.b16 %v560
        %v655 = vunpack.c.l.b16 %v570
        %v656 = vunpack.c.l.b16 %v584
        %v657 = vunpack.c.l.b16 %v594
        %v658 = vunpack.c.l.b16 %v608
        %v659 = vunpack.c.l.b16 %v618
        %v660 = vpack.c.b16 %v629, %v628
        %v661 = vpack.c.b16 %v631, %v630
        %v662 = vpack.c.b16 %v633, %v632
        %v663 = vpack.c.b16 %v635, %v634
        %v664 = vpack.c.b16 %v637, %v636
        %v665 = vpack.c.b16 %v639, %v638
        %v666 = vpack.c.b16 %v641, %v640
        %v667 = vpack.c.b16 %v643, %v642
        %v668 = vpack.c.b16 %v645, %v644
        %v669 = vpack.c.b16 %v647, %v646
        %v670 = vpack.c.b16 %v649, %v648
        %v671 = vpack.c.b16 %v651, %v650
        %v672 = vpack.c.b16 %v653, %v652
        %v673 = vpack.c.b16 %v655, %v654
        %v674 = vpack.c.b16 %v657, %v656
        %v675 = vpack.c.b16 %v659, %v658
        %v684 = vunpack.c.l.b16 %v620
        %v685 = vunpack.c.l.b16 %v621
        %v686 = vunpack.c.l.b16 %v622
        %v687 = vunpack.c.l.b16 %v623
        %v688 = vunpack.c.l.b16 %v624
        %v689 = vunpack.c.l.b16 %v625
        %v690 = vunpack.c.l.b16 %v626
        %v691 = vunpack.c.l.b16 %v627
        %v692 = vpack.c.b16 %v685, %v684
        %v693 = vpack.c.b16 %v687, %v686
        %v694 = vpack.c.b16 %v689, %v688
        %v695 = vpack.c.b16 %v691, %v690
        %vm700 = vcmask 523264
        %v702 = vsel %vm700, %v660, 0
        %v705 = vsel %vm700, %v661, 0
        %v708 = vsel %vm700, %v662, 0
        %v711 = vsel %vm700, %v663, 0
        %v714 = vsel %vm700, %v664, 0
        %v717 = vsel %vm700, %v665, 0
        %v720 = vsel %vm700, %v666, 0
        %v723 = vsel %vm700, %v667, 0
        %v726 = vsel %vm700, %v668, 0
        %v729 = vsel %vm700, %v669, 0
        %v732 = vsel %vm700, %v670, 0
        %v735 = vsel %vm700, %v671, 0
        %v738 = vsel %vm700, %v672, 0
        %v741 = vsel %vm700, %v673, 0
        %v744 = vsel %vm700, %v674, 0
        %v747 = vsel %vm700, %v675, 0
        %749 = vmatprep.subr.bf16.mxu0 0
        %750 = vmatpush1.bf16.msra.mxu0 %v692
        %751 = vmatprep.subr.bf16.mxu0 0
        %752 = vmatpush1.bf16.msra.mxu0 %v693
        %753 = vmatprep.subr.bf16.mxu0 0
        %754 = vmatpush1.bf16.msra.mxu0 %v694
        %755 = vmatprep.subr.bf16.mxu0 0
        %756 = vmatpush1.bf16.msra.mxu0 %v695
        %757 = vmatprep.subr.bf16.mxu0 0
        %758 = vmatpush1.bf16.msra.mxu0 0
        %759 = vmatprep.subr.bf16.mxu0 0
        %760 = vmatpush1.bf16.msra.mxu0 0
        %761 = vmatprep.subr.bf16.mxu0 0
        %762 = vmatpush1.bf16.msra.mxu0 0
        %763 = vmatprep.subr.bf16.mxu0 0
        %764 = vmatpush1.bf16.msra.mxu0 0
        %765 = vmatprep.subr.bf16.mxu0 0
        %766 = vmatpush1.bf16.msra.mxu0 0
        %767 = vmatprep.subr.bf16.mxu0 0
        %768 = vmatpush1.bf16.msra.mxu0 0
        %769 = vmatprep.subr.bf16.mxu0 0
        %770 = vmatpush1.bf16.msra.mxu0 0
        %771 = vmatprep.subr.bf16.mxu0 0
        %772 = vmatpush1.bf16.msra.mxu0 0
        %773 = vmatprep.subr.bf16.mxu0 0
        %774 = vmatpush1.bf16.msra.mxu0 0
        %775 = vmatprep.subr.bf16.mxu0 0
        %776 = vmatpush1.bf16.msra.mxu0 0
        %777 = vmatprep.subr.bf16.mxu0 0
        %778 = vmatpush1.bf16.msra.mxu0 0
        %779 = vmatprep.subr.bf16.mxu0 0
        %780 = vmatpush1.bf16.msra.mxu0 0
        %781 = vmatprep.mubr.bf16.mxu0 0
        %782 = vmatmul.mubr.bf16.gmra.mrb[0].mxu0 %v702
        %v783 = vpop.f32.mrb[0].mxu0
        %v784 = vadd.f32 0.0, %v783
        %v785 = vpop.f32.mrb[0].mxu0
        %v786 = vpop.f32.mrb[0].mxu0
        %v787 = vadd.f32 0.0, %v786
        %v788 = vpop.f32.mrb[0].mxu0
        %789 = vmatprep.mubr.bf16.mxu0 0
        %790 = vmatmul.mubr.bf16.gmra.mrb[0].mxu0 %v705
        %v791 = vpop.f32.mrb[0].mxu0
        %v792 = vadd.f32 0.0, %v791
        %v793 = vpop.f32.mrb[0].mxu0
        %v794 = vpop.f32.mrb[0].mxu0
        %v795 = vadd.f32 0.0, %v794
        %v796 = vpop.f32.mrb[0].mxu0
        %797 = vmatprep.mubr.bf16.mxu0 0
        %798 = vmatmul.mubr.bf16.gmra.mrb[0].mxu0 %v708
        %v799 = vpop.f32.mrb[0].mxu0
        %v800 = vadd.f32 0.0, %v799
        %v801 = vpop.f32.mrb[0].mxu0
        %v802 = vpop.f32.mrb[0].mxu0
        %v803 = vadd.f32 0.0, %v802
        %v804 = vpop.f32.mrb[0].mxu0
        %805 = vmatprep.mubr.bf16.mxu0 0
        %806 = vmatmul.mubr.bf16.gmra.mrb[0].mxu0 %v711
        %v807 = vpop.f32.mrb[0].mxu0
        %v808 = vadd.f32 0.0, %v807
        %v809 = vpop.f32.mrb[0].mxu0
        %v810 = vpop.f32.mrb[0].mxu0
        %v811 = vadd.f32 0.0, %v810
        %v812 = vpop.f32.mrb[0].mxu0
        %813 = vmatprep.mubr.bf16.mxu0 0
        %814 = vmatmul.mubr.bf16.gmra.mrb[0].mxu0 %v714
        %v815 = vpop.f32.mrb[0].mxu0
        %v816 = vadd.f32 0.0, %v815
        %v817 = vpop.f32.mrb[0].mxu0
        %v818 = vpop.f32.mrb[0].mxu0
        %v819 = vadd.f32 0.0, %v818
        %v820 = vpop.f32.mrb[0].mxu0
        %821 = vmatprep.mubr.bf16.mxu0 0
        %822 = vmatmul.mubr.bf16.gmra.mrb[0].mxu0 %v717
        %v823 = vpop.f32.mrb[0].mxu0
        %v824 = vadd.f32 0.0, %v823
        %v825 = vpop.f32.mrb[0].mxu0
        %v826 = vpop.f32.mrb[0].mxu0
        %v827 = vadd.f32 0.0, %v826
        %v828 = vpop.f32.mrb[0].mxu0
        %829 = vmatprep.mubr.bf16.mxu0 0
        %830 = vmatmul.mubr.bf16.gmra.mrb[0].mxu0 %v720
        %v831 = vpop.f32.mrb[0].mxu0
        %v832 = vadd.f32 0.0, %v831
        %v833 = vpop.f32.mrb[0].mxu0
        %v834 = vpop.f32.mrb[0].mxu0
        %v835 = vadd.f32 0.0, %v834
        %v836 = vpop.f32.mrb[0].mxu0
        %837 = vmatprep.mubr.bf16.mxu0 0
        %838 = vmatmul.mubr.bf16.gmra.mrb[0].mxu0 %v723
        %v839 = vpop.f32.mrb[0].mxu0
        %v840 = vadd.f32 0.0, %v839
        %v841 = vpop.f32.mrb[0].mxu0
        %v842 = vpop.f32.mrb[0].mxu0
        %v843 = vadd.f32 0.0, %v842
        %v844 = vpop.f32.mrb[0].mxu0
        %845 = vmatprep.mubr.bf16.mxu0 0
        %846 = vmatmul.mubr.bf16.gmra.mrb[0].mxu0 %v726
        %v847 = vpop.f32.mrb[0].mxu0
        %v848 = vadd.f32 0.0, %v847
        %v849 = vpop.f32.mrb[0].mxu0
        %v850 = vpop.f32.mrb[0].mxu0
        %v851 = vadd.f32 0.0, %v850
        %v852 = vpop.f32.mrb[0].mxu0
        %853 = vmatprep.mubr.bf16.mxu0 0
        %854 = vmatmul.mubr.bf16.gmra.mrb[0].mxu0 %v729
        %v855 = vpop.f32.mrb[0].mxu0
        %v856 = vadd.f32 0.0, %v855
        %v857 = vpop.f32.mrb[0].mxu0
        %v858 = vpop.f32.mrb[0].mxu0
        %v859 = vadd.f32 0.0, %v858
        %v860 = vpop.f32.mrb[0].mxu0
        %861 = vmatprep.mubr.bf16.mxu0 0
        %862 = vmatmul.mubr.bf16.gmra.mrb[0].mxu0 %v732
        %v863 = vpop.f32.mrb[0].mxu0
        %v864 = vadd.f32 0.0, %v863
        %v865 = vpop.f32.mrb[0].mxu0
        %v866 = vpop.f32.mrb[0].mxu0
        %v867 = vadd.f32 0.0, %v866
        %v868 = vpop.f32.mrb[0].mxu0
        %869 = vmatprep.mubr.bf16.mxu0 0
        %870 = vmatmul.mubr.bf16.gmra.mrb[0].mxu0 %v735
        %v871 = vpop.f32.mrb[0].mxu0
        %v872 = vadd.f32 0.0, %v871
        %v873 = vpop.f32.mrb[0].mxu0
        %v874 = vpop.f32.mrb[0].mxu0
        %v875 = vadd.f32 0.0, %v874
        %v876 = vpop.f32.mrb[0].mxu0
        %877 = vmatprep.mubr.bf16.mxu0 0
        %878 = vmatmul.mubr.bf16.gmra.mrb[0].mxu0 %v738
        %v879 = vpop.f32.mrb[0].mxu0
        %v880 = vadd.f32 0.0, %v879
        %v881 = vpop.f32.mrb[0].mxu0
        %v882 = vpop.f32.mrb[0].mxu0
        %v883 = vadd.f32 0.0, %v882
        %v884 = vpop.f32.mrb[0].mxu0
        %885 = vmatprep.mubr.bf16.mxu0 0
        %886 = vmatmul.mubr.bf16.gmra.mrb[0].mxu0 %v741
        %v887 = vpop.f32.mrb[0].mxu0
        %v888 = vadd.f32 0.0, %v887
        %v889 = vpop.f32.mrb[0].mxu0
        %v890 = vpop.f32.mrb[0].mxu0
        %v891 = vadd.f32 0.0, %v890
        %v892 = vpop.f32.mrb[0].mxu0
        %893 = vmatprep.mubr.bf16.mxu0 0
        %894 = vmatmul.mubr.bf16.gmra.mrb[0].mxu0 %v744
        %v895 = vpop.f32.mrb[0].mxu0
        %v896 = vadd.f32 0.0, %v895
        %v897 = vpop.f32.mrb[0].mxu0
        %v898 = vpop.f32.mrb[0].mxu0
        %v899 = vadd.f32 0.0, %v898
        %v900 = vpop.f32.mrb[0].mxu0
        %901 = vmatprep.mubr.bf16.mxu0 0
        %902 = vmatmul.mubr.bf16.gmra.mrb[0].mxu0 %v747
        %v903 = vpop.f32.mrb[0].mxu0
        %v904 = vadd.f32 0.0, %v903
        %v905 = vpop.f32.mrb[0].mxu0
        %v906 = vpop.f32.mrb[0].mxu0
        %v907 = vadd.f32 0.0, %v906
        %v908 = vpop.f32.mrb[0].mxu0
        %909 = vdwg.mxu0
        %v942 = vunpack.c.l.b16 %v176
        %v943 = vunpack.c.l.b16 %v177
        %v944 = vunpack.c.l.b16 %v178
        %v945 = vunpack.c.l.b16 %v179
        %v946 = vunpack.c.l.b16 %v180
        %v947 = vunpack.c.l.b16 %v181
        %v948 = vunpack.c.l.b16 %v182
        %v949 = vunpack.c.l.b16 %v183
        %v950 = vunpack.c.l.b16 %v184
        %v951 = vunpack.c.l.b16 %v185
        %v952 = vunpack.c.l.b16 %v186
        %v953 = vunpack.c.l.b16 %v187
        %v954 = vunpack.c.l.b16 %v188
        %v955 = vunpack.c.l.b16 %v189
        %v956 = vunpack.c.l.b16 %v190
        %v957 = vunpack.c.l.b16 %v191
        %v958 = vunpack.c.l.b16 %v192
        %v959 = vunpack.c.l.b16 %v193
        %v960 = vunpack.c.l.b16 %v194
        %v961 = vunpack.c.l.b16 %v195
        %v962 = vunpack.c.l.b16 %v196
        %v963 = vunpack.c.l.b16 %v197
        %v964 = vunpack.c.l.b16 %v198
        %v965 = vunpack.c.l.b16 %v199
        %v966 = vunpack.c.l.b16 %v200
        %v967 = vunpack.c.l.b16 %v201
        %v968 = vunpack.c.l.b16 %v202
        %v969 = vunpack.c.l.b16 %v203
        %v970 = vunpack.c.l.b16 %v204
        %v971 = vunpack.c.l.b16 %v205
        %v972 = vunpack.c.l.b16 %v206
        %v973 = vunpack.c.l.b16 %v207
        %v974 = vpack.c.b16 %v943, %v942
        %v975 = vpack.c.b16 %v945, %v944
        %v976 = vpack.c.b16 %v947, %v946
        %v977 = vpack.c.b16 %v949, %v948
        %v978 = vpack.c.b16 %v951, %v950
        %v979 = vpack.c.b16 %v953, %v952
        %v980 = vpack.c.b16 %v955, %v954
        %v981 = vpack.c.b16 %v957, %v956
        %v982 = vpack.c.b16 %v959, %v958
        %v983 = vpack.c.b16 %v961, %v960
        %v984 = vpack.c.b16 %v963, %v962
        %v985 = vpack.c.b16 %v965, %v964
        %v986 = vpack.c.b16 %v967, %v966
        %v987 = vpack.c.b16 %v969, %v968
        %v988 = vpack.c.b16 %v971, %v970
        %v989 = vpack.c.b16 %v973, %v972
        %v998 = vunpack.c.l.b16 %v208
        %v999 = vunpack.c.l.b16 %v209
        %v1000 = vunpack.c.l.b16 %v210
        %v1001 = vunpack.c.l.b16 %v211
        %v1002 = vunpack.c.l.b16 %v212
        %v1003 = vunpack.c.l.b16 %v213
        %v1004 = vunpack.c.l.b16 %v214
        %v1005 = vunpack.c.l.b16 %v215
        %v1006 = vpack.c.b16 %v999, %v998
        %v1007 = vpack.c.b16 %v1001, %v1000
        %v1008 = vpack.c.b16 %v1003, %v1002
        %v1009 = vpack.c.b16 %v1005, %v1004
        %v1015 = vsel %vm700, %v974, 0
        %v1018 = vsel %vm700, %v975, 0
        %v1021 = vsel %vm700, %v976, 0
        %v1024 = vsel %vm700, %v977, 0
        %v1027 = vsel %vm700, %v978, 0
        %v1030 = vsel %vm700, %v979, 0
        %v1033 = vsel %vm700, %v980, 0
        %v1036 = vsel %vm700, %v981, 0
        %v1039 = vsel %vm700, %v982, 0
        %v1042 = vsel %vm700, %v983, 0
        %v1045 = vsel %vm700, %v984, 0
        %v1048 = vsel %vm700, %v985, 0
        %v1051 = vsel %vm700, %v986, 0
        %v1054 = vsel %vm700, %v987, 0
        %v1057 = vsel %vm700, %v988, 0
        %v1060 = vsel %vm700, %v989, 0
        %1062 = vmatprep.subr.bf16.mxu0 0
        %1063 = vmatpush1.bf16.msra.mxu0 %v1006
        %1064 = vmatprep.subr.bf16.mxu0 0
        %1065 = vmatpush1.bf16.msra.mxu0 %v1007
        %1066 = vmatprep.subr.bf16.mxu0 0
        %1067 = vmatpush1.bf16.msra.mxu0 %v1008
        %1068 = vmatprep.subr.bf16.mxu0 0
        %1069 = vmatpush1.bf16.msra.mxu0 %v1009
        %1070 = vmatprep.subr.bf16.mxu0 0
        %1071 = vmatpush1.bf16.msra.mxu0 0
        %1072 = vmatprep.subr.bf16.mxu0 0
        %1073 = vmatpush1.bf16.msra.mxu0 0
        %1074 = vmatprep.subr.bf16.mxu0 0
        %1075 = vmatpush1.bf16.msra.mxu0 0
        %1076 = vmatprep.subr.bf16.mxu0 0
        %1077 = vmatpush1.bf16.msra.mxu0 0
        %1078 = vmatprep.subr.bf16.mxu0 0
        %1079 = vmatpush1.bf16.msra.mxu0 0
        %1080 = vmatprep.subr.bf16.mxu0 0
        %1081 = vmatpush1.bf16.msra.mxu0 0
        %1082 = vmatprep.subr.bf16.mxu0 0
        %1083 = vmatpush1.bf16.msra.mxu0 0
        %1084 = vmatprep.subr.bf16.mxu0 0
        %1085 = vmatpush1.bf16.msra.mxu0 0
        %1086 = vmatprep.subr.bf16.mxu0 0
        %1087 = vmatpush1.bf16.msra.mxu0 0
        %1088 = vmatprep.subr.bf16.mxu0 0
        %1089 = vmatpush1.bf16.msra.mxu0 0
        %1090 = vmatprep.subr.bf16.mxu0 0
        %1091 = vmatpush1.bf16.msra.mxu0 0
        %1092 = vmatprep.subr.bf16.mxu0 0
        %1093 = vmatpush1.bf16.msra.mxu0 0
        %1094 = vmatprep.mubr.bf16.mxu0 0
        %1095 = vmatmul.mubr.bf16.gmra.mrb[0].mxu0 %v1015
        %v1096 = vpop.f32.mrb[0].mxu0
        %v1097 = vadd.f32 %v784, %v1096
        %v1098 = vpop.f32.mrb[0].mxu0
        %v1099 = vpop.f32.mrb[0].mxu0
        %v1100 = vadd.f32 %v787, %v1099
        %v1101 = vpop.f32.mrb[0].mxu0
        %1102 = vmatprep.mubr.bf16.mxu0 0
        %1103 = vmatmul.mubr.bf16.gmra.mrb[0].mxu0 %v1018
        %v1104 = vpop.f32.mrb[0].mxu0
        %v1105 = vadd.f32 %v792, %v1104
        %v1106 = vpop.f32.mrb[0].mxu0
        %v1107 = vpop.f32.mrb[0].mxu0
        %v1108 = vadd.f32 %v795, %v1107
        %v1109 = vpop.f32.mrb[0].mxu0
        %1110 = vmatprep.mubr.bf16.mxu0 0
        %1111 = vmatmul.mubr.bf16.gmra.mrb[0].mxu0 %v1021
        %v1112 = vpop.f32.mrb[0].mxu0
        %v1113 = vadd.f32 %v800, %v1112
        %v1114 = vpop.f32.mrb[0].mxu0
        %v1115 = vpop.f32.mrb[0].mxu0
        %v1116 = vadd.f32 %v803, %v1115
        %v1117 = vpop.f32.mrb[0].mxu0
        %1118 = vmatprep.mubr.bf16.mxu0 0
        %1119 = vmatmul.mubr.bf16.gmra.mrb[0].mxu0 %v1024
        %v1120 = vpop.f32.mrb[0].mxu0
        %v1121 = vadd.f32 %v808, %v1120
        %v1122 = vpop.f32.mrb[0].mxu0
        %v1123 = vpop.f32.mrb[0].mxu0
        %v1124 = vadd.f32 %v811, %v1123
        %v1125 = vpop.f32.mrb[0].mxu0
        %1126 = vmatprep.mubr.bf16.mxu0 0
        %1127 = vmatmul.mubr.bf16.gmra.mrb[0].mxu0 %v1027
        %v1128 = vpop.f32.mrb[0].mxu0
        %v1129 = vadd.f32 %v816, %v1128
        %v1130 = vpop.f32.mrb[0].mxu0
        %v1131 = vpop.f32.mrb[0].mxu0
        %v1132 = vadd.f32 %v819, %v1131
        %v1133 = vpop.f32.mrb[0].mxu0
        %1134 = vmatprep.mubr.bf16.mxu0 0
        %1135 = vmatmul.mubr.bf16.gmra.mrb[0].mxu0 %v1030
        %v1136 = vpop.f32.mrb[0].mxu0
        %v1137 = vadd.f32 %v824, %v1136
        %v1138 = vpop.f32.mrb[0].mxu0
        %v1139 = vpop.f32.mrb[0].mxu0
        %v1140 = vadd.f32 %v827, %v1139
        %v1141 = vpop.f32.mrb[0].mxu0
        %1142 = vmatprep.mubr.bf16.mxu0 0
        %1143 = vmatmul.mubr.bf16.gmra.mrb[0].mxu0 %v1033
        %v1144 = vpop.f32.mrb[0].mxu0
        %v1145 = vadd.f32 %v832, %v1144
        %v1146 = vpop.f32.mrb[0].mxu0
        %v1147 = vpop.f32.mrb[0].mxu0
        %v1148 = vadd.f32 %v835, %v1147
        %v1149 = vpop.f32.mrb[0].mxu0
        %1150 = vmatprep.mubr.bf16.mxu0 0
        %1151 = vmatmul.mubr.bf16.gmra.mrb[0].mxu0 %v1036
        %v1152 = vpop.f32.mrb[0].mxu0
        %v1153 = vadd.f32 %v840, %v1152
        %v1154 = vpop.f32.mrb[0].mxu0
        %v1155 = vpop.f32.mrb[0].mxu0
        %v1156 = vadd.f32 %v843, %v1155
        %v1157 = vpop.f32.mrb[0].mxu0
        %1158 = vmatprep.mubr.bf16.mxu0 0
        %1159 = vmatmul.mubr.bf16.gmra.mrb[0].mxu0 %v1039
        %v1160 = vpop.f32.mrb[0].mxu0
        %v1161 = vadd.f32 %v848, %v1160
        %v1162 = vpop.f32.mrb[0].mxu0
        %v1163 = vpop.f32.mrb[0].mxu0
        %v1164 = vadd.f32 %v851, %v1163
        %v1165 = vpop.f32.mrb[0].mxu0
        %1166 = vmatprep.mubr.bf16.mxu0 0
        %1167 = vmatmul.mubr.bf16.gmra.mrb[0].mxu0 %v1042
        %v1168 = vpop.f32.mrb[0].mxu0
        %v1169 = vadd.f32 %v856, %v1168
        %v1170 = vpop.f32.mrb[0].mxu0
        %v1171 = vpop.f32.mrb[0].mxu0
        %v1172 = vadd.f32 %v859, %v1171
        %v1173 = vpop.f32.mrb[0].mxu0
        %1174 = vmatprep.mubr.bf16.mxu0 0
        %1175 = vmatmul.mubr.bf16.gmra.mrb[0].mxu0 %v1045
        %v1176 = vpop.f32.mrb[0].mxu0
        %v1177 = vadd.f32 %v864, %v1176
        %v1178 = vpop.f32.mrb[0].mxu0
        %v1179 = vpop.f32.mrb[0].mxu0
        %v1180 = vadd.f32 %v867, %v1179
        %v1181 = vpop.f32.mrb[0].mxu0
        %1182 = vmatprep.mubr.bf16.mxu0 0
        %1183 = vmatmul.mubr.bf16.gmra.mrb[0].mxu0 %v1048
        %v1184 = vpop.f32.mrb[0].mxu0
        %v1185 = vadd.f32 %v872, %v1184
        %v1186 = vpop.f32.mrb[0].mxu0
        %v1187 = vpop.f32.mrb[0].mxu0
        %v1188 = vadd.f32 %v875, %v1187
        %v1189 = vpop.f32.mrb[0].mxu0
        %1190 = vmatprep.mubr.bf16.mxu0 0
        %1191 = vmatmul.mubr.bf16.gmra.mrb[0].mxu0 %v1051
        %v1192 = vpop.f32.mrb[0].mxu0
        %v1193 = vadd.f32 %v880, %v1192
        %v1194 = vpop.f32.mrb[0].mxu0
        %v1195 = vpop.f32.mrb[0].mxu0
        %v1196 = vadd.f32 %v883, %v1195
        %v1197 = vpop.f32.mrb[0].mxu0
        %1198 = vmatprep.mubr.bf16.mxu0 0
        %1199 = vmatmul.mubr.bf16.gmra.mrb[0].mxu0 %v1054
        %v1200 = vpop.f32.mrb[0].mxu0
        %v1201 = vadd.f32 %v888, %v1200
        %v1202 = vpop.f32.mrb[0].mxu0
        %v1203 = vpop.f32.mrb[0].mxu0
        %v1204 = vadd.f32 %v891, %v1203
        %v1205 = vpop.f32.mrb[0].mxu0
        %1206 = vmatprep.mubr.bf16.mxu0 0
        %1207 = vmatmul.mubr.bf16.gmra.mrb[0].mxu0 %v1057
        %v1208 = vpop.f32.mrb[0].mxu0
        %v1209 = vadd.f32 %v896, %v1208
        %v1210 = vpop.f32.mrb[0].mxu0
        %v1211 = vpop.f32.mrb[0].mxu0
        %v1212 = vadd.f32 %v899, %v1211
        %v1213 = vpop.f32.mrb[0].mxu0
        %1214 = vmatprep.mubr.bf16.mxu0 0
        %1215 = vmatmul.mubr.bf16.gmra.mrb[0].mxu0 %v1060
        %v1216 = vpop.f32.mrb[0].mxu0
        %v1217 = vadd.f32 %v904, %v1216
        %v1218 = vpop.f32.mrb[0].mxu0
        %v1219 = vpop.f32.mrb[0].mxu0
        %v1220 = vadd.f32 %v907, %v1219
        %v1221 = vpop.f32.mrb[0].mxu0
        %1222 = vdwg.mxu0
        %v1223 = vld [vmem:[%s172] sm:$0xe]
        %v1224 = vld [vmem:[%s172 + $0xc] sm:$0xe]
        %v1225 = vld [vmem:[%s172 + $0x18] sm:$0xe]
        %v1226 = vld [vmem:[%s172 + $0x24] sm:$0xe]
        %v1227 = vld [vmem:[%s172 + $0x30] sm:$0xe]
        %v1228 = vld [vmem:[%s172 + $0x3c] sm:$0xe]
        %v1229 = vld [vmem:[%s172 + $0x48] sm:$0xe]
        %v1230 = vld [vmem:[%s172 + $0x54] sm:$0xe]
        %v1231 = vld [vmem:[%s172 + $0x60] sm:$0xe]
        %v1232 = vld [vmem:[%s172 + $0x6c] sm:$0xe]
        %v1233 = vld [vmem:[%s172 + $0x78] sm:$0xe]
        %v1234 = vld [vmem:[%s172 + $0x84] sm:$0xe]
        %v1235 = vld [vmem:[%s172 + $0x90] sm:$0xe]
        %v1236 = vld [vmem:[%s172 + $0x9c] sm:$0xe]
        %v1237 = vld [vmem:[%s172 + $0xa8] sm:$0xe]
        %v1238 = vld [vmem:[%s172 + $0xb4] sm:$0xe]
        %vm1271 = vcmask 1042432
        %vm1272 = vcmask 1046532
        %vm1273 = vmor %vm1271, %vm1272
        %v1274 = vrot.slane %v1223, 5
        %v1275 = vrot.slane %v1274, 4
        %v1276 = vrot.slane %v177, 5
        %v1277 = vsel %vm1273, %v1275, %v1276
        %v1278 = vrot.slane %v1276, 4
        %v1279 = vrot.slane %v216, 5
        %v1280 = vsel %vm1273, %v1278, %v1279
        %v1281 = vrot.slane %v1224, 5
        %v1282 = vrot.slane %v1281, 4
        %v1283 = vrot.slane %v179, 5
        %v1284 = vsel %vm1273, %v1282, %v1283
        %v1285 = vrot.slane %v1283, 4
        %v1286 = vrot.slane %v217, 5
        %v1287 = vsel %vm1273, %v1285, %v1286
        %v1288 = vrot.slane %v1225, 5
        %v1289 = vrot.slane %v1288, 4
        %v1290 = vrot.slane %v181, 5
        %v1291 = vsel %vm1273, %v1289, %v1290
        %v1292 = vrot.slane %v1290, 4
        %v1293 = vrot.slane %v218, 5
        %v1294 = vsel %vm1273, %v1292, %v1293
        %v1295 = vrot.slane %v1226, 5
        %v1296 = vrot.slane %v1295, 4
        %v1297 = vrot.slane %v183, 5
        %v1298 = vsel %vm1273, %v1296, %v1297
        %v1299 = vrot.slane %v1297, 4
        %v1300 = vrot.slane %v219, 5
        %v1301 = vsel %vm1273, %v1299, %v1300
        %v1302 = vrot.slane %v1227, 5
        %v1303 = vrot.slane %v1302, 4
        %v1304 = vrot.slane %v185, 5
        %v1305 = vsel %vm1273, %v1303, %v1304
        %v1306 = vrot.slane %v1304, 4
        %v1307 = vrot.slane %v220, 5
        %v1308 = vsel %vm1273, %v1306, %v1307
        %v1309 = vrot.slane %v1228, 5
        %v1310 = vrot.slane %v1309, 4
        %v1311 = vrot.slane %v187, 5
        %v1312 = vsel %vm1273, %v1310, %v1311
        %v1313 = vrot.slane %v1311, 4
        %v1314 = vrot.slane %v221, 5
        %v1315 = vsel %vm1273, %v1313, %v1314
        %v1316 = vrot.slane %v1229, 5
        %v1317 = vrot.slane %v1316, 4
        %v1318 = vrot.slane %v189, 5
        %v1319 = vsel %vm1273, %v1317, %v1318
        %v1320 = vrot.slane %v1318, 4
        %v1321 = vrot.slane %v222, 5
        %v1322 = vsel %vm1273, %v1320, %v1321
        %v1323 = vrot.slane %v1230, 5
        %v1324 = vrot.slane %v1323, 4
        %v1325 = vrot.slane %v191, 5
        %v1326 = vsel %vm1273, %v1324, %v1325
        %v1327 = vrot.slane %v1325, 4
        %v1328 = vrot.slane %v223, 5
        %v1329 = vsel %vm1273, %v1327, %v1328
        %v1330 = vrot.slane %v1231, 5
        %v1331 = vrot.slane %v1330, 4
        %v1332 = vrot.slane %v193, 5
        %v1333 = vsel %vm1273, %v1331, %v1332
        %v1334 = vrot.slane %v1332, 4
        %v1335 = vrot.slane %v224, 5
        %v1336 = vsel %vm1273, %v1334, %v1335
        %v1337 = vrot.slane %v1232, 5
        %v1338 = vrot.slane %v1337, 4
        %v1339 = vrot.slane %v195, 5
        %v1340 = vsel %vm1273, %v1338, %v1339
        %v1341 = vrot.slane %v1339, 4
        %v1342 = vrot.slane %v225, 5
        %v1343 = vsel %vm1273, %v1341, %v1342
        %v1344 = vrot.slane %v1233, 5
        %v1345 = vrot.slane %v1344, 4
        %v1346 = vrot.slane %v197, 5
        %v1347 = vsel %vm1273, %v1345, %v1346
        %v1348 = vrot.slane %v1346, 4
        %v1349 = vrot.slane %v226, 5
        %v1350 = vsel %vm1273, %v1348, %v1349
        %v1351 = vrot.slane %v1234, 5
        %v1352 = vrot.slane %v1351, 4
        %v1353 = vrot.slane %v199, 5
        %v1354 = vsel %vm1273, %v1352, %v1353
        %v1355 = vrot.slane %v1353, 4
        %v1356 = vrot.slane %v227, 5
        %v1357 = vsel %vm1273, %v1355, %v1356
        %v1358 = vrot.slane %v1235, 5
        %v1359 = vrot.slane %v1358, 4
        %v1360 = vrot.slane %v201, 5
        %v1361 = vsel %vm1273, %v1359, %v1360
        %v1362 = vrot.slane %v1360, 4
        %v1363 = vrot.slane %v228, 5
        %v1364 = vsel %vm1273, %v1362, %v1363
        %v1365 = vrot.slane %v1236, 5
        %v1366 = vrot.slane %v1365, 4
        %v1367 = vrot.slane %v203, 5
        %v1368 = vsel %vm1273, %v1366, %v1367
        %v1369 = vrot.slane %v1367, 4
        %v1370 = vrot.slane %v229, 5
        %v1371 = vsel %vm1273, %v1369, %v1370
        %v1372 = vrot.slane %v1237, 5
        %v1373 = vrot.slane %v1372, 4
        %v1374 = vrot.slane %v205, 5
        %v1375 = vsel %vm1273, %v1373, %v1374
        %v1376 = vrot.slane %v1374, 4
        %v1377 = vrot.slane %v230, 5
        %v1378 = vsel %vm1273, %v1376, %v1377
        %v1379 = vrot.slane %v1238, 5
        %v1380 = vrot.slane %v1379, 4
        %v1381 = vrot.slane %v207, 5
        %v1382 = vsel %vm1273, %v1380, %v1381
        %v1383 = vrot.slane %v1381, 4
        %v1384 = vrot.slane %v231, 5
        %v1385 = vsel %vm1273, %v1383, %v1384
        %s1386 = scalar_lea.vmem %s1, 64
        %v1387 = vld [vmem:[%s1386] sm:$0xf]
        %v1388 = vld [vmem:[%s1386 + $0x4] sm:$0xf]
        %v1389 = vld [vmem:[%s1386 + $0x8] sm:$0xf]
        %v1390 = vld [vmem:[%s1386 + $0xc] sm:$0xf]
        %v1391 = vld [vmem:[%s1386 + $0x10] sm:$0xf]
        %v1392 = vld [vmem:[%s1386 + $0x14] sm:$0xf]
        %v1393 = vld [vmem:[%s1386 + $0x18] sm:$0xf]
        %v1394 = vld [vmem:[%s1386 + $0x1c] sm:$0xf]
        %v1395 = vunpack.c.l.b16 %v1277
        %v1396 = vunpack.c.l.b16 %v1280
        %v1397 = vunpack.c.l.b16 %v1284
        %v1398 = vunpack.c.l.b16 %v1287
        %v1399 = vunpack.c.l.b16 %v1291
        %v1400 = vunpack.c.l.b16 %v1294
        %v1401 = vunpack.c.l.b16 %v1298
        %v1402 = vunpack.c.l.b16 %v1301
        %v1403 = vunpack.c.l.b16 %v1305
        %v1404 = vunpack.c.l.b16 %v1308
        %v1405 = vunpack.c.l.b16 %v1312
        %v1406 = vunpack.c.l.b16 %v1315
        %v1407 = vunpack.c.l.b16 %v1319
        %v1408 = vunpack.c.l.b16 %v1322
        %v1409 = vunpack.c.l.b16 %v1326
        %v1410 = vunpack.c.l.b16 %v1329
        %v1411 = vunpack.c.l.b16 %v1333
        %v1412 = vunpack.c.l.b16 %v1336
        %v1413 = vunpack.c.l.b16 %v1340
        %v1414 = vunpack.c.l.b16 %v1343
        %v1415 = vunpack.c.l.b16 %v1347
        %v1416 = vunpack.c.l.b16 %v1350
        %v1417 = vunpack.c.l.b16 %v1354
        %v1418 = vunpack.c.l.b16 %v1357
        %v1419 = vunpack.c.l.b16 %v1361
        %v1420 = vunpack.c.l.b16 %v1364
        %v1421 = vunpack.c.l.b16 %v1368
        %v1422 = vunpack.c.l.b16 %v1371
        %v1423 = vunpack.c.l.b16 %v1375
        %v1424 = vunpack.c.l.b16 %v1378
        %v1425 = vunpack.c.l.b16 %v1382
        %v1426 = vunpack.c.l.b16 %v1385
        %v1427 = vpack.c.b16 %v1396, %v1395
        %v1428 = vpack.c.b16 %v1398, %v1397
        %v1429 = vpack.c.b16 %v1400, %v1399
        %v1430 = vpack.c.b16 %v1402, %v1401
        %v1431 = vpack.c.b16 %v1404, %v1403
        %v1432 = vpack.c.b16 %v1406, %v1405
        %v1433 = vpack.c.b16 %v1408, %v1407
        %v1434 = vpack.c.b16 %v1410, %v1409
        %v1435 = vpack.c.b16 %v1412, %v1411
        %v1436 = vpack.c.b16 %v1414, %v1413
        %v1437 = vpack.c.b16 %v1416, %v1415
        %v1438 = vpack.c.b16 %v1418, %v1417
        %v1439 = vpack.c.b16 %v1420, %v1419
        %v1440 = vpack.c.b16 %v1422, %v1421
        %v1441 = vpack.c.b16 %v1424, %v1423
        %v1442 = vpack.c.b16 %v1426, %v1425
        %v1451 = vunpack.c.l.b16 %v1387
        %v1452 = vunpack.c.l.b16 %v1388
        %v1453 = vunpack.c.l.b16 %v1389
        %v1454 = vunpack.c.l.b16 %v1390
        %v1455 = vunpack.c.l.b16 %v1391
        %v1456 = vunpack.c.l.b16 %v1392
        %v1457 = vunpack.c.l.b16 %v1393
        %v1458 = vunpack.c.l.b16 %v1394
        %v1459 = vpack.c.b16 %v1452, %v1451
        %v1460 = vpack.c.b16 %v1454, %v1453
        %v1461 = vpack.c.b16 %v1456, %v1455
        %v1462 = vpack.c.b16 %v1458, %v1457
        %v1468 = vsel %vm700, %v1427, 0
        %v1471 = vsel %vm700, %v1428, 0
        %v1474 = vsel %vm700, %v1429, 0
        %v1477 = vsel %vm700, %v1430, 0
        %v1480 = vsel %vm700, %v1431, 0
        %v1483 = vsel %vm700, %v1432, 0
        %v1486 = vsel %vm700, %v1433, 0
        %v1489 = vsel %vm700, %v1434, 0
        %v1492 = vsel %vm700, %v1435, 0
        %v1495 = vsel %vm700, %v1436, 0
        %v1498 = vsel %vm700, %v1437, 0
        %v1501 = vsel %vm700, %v1438, 0
        %v1504 = vsel %vm700, %v1439, 0
        %v1507 = vsel %vm700, %v1440, 0
        %v1510 = vsel %vm700, %v1441, 0
        %v1513 = vsel %vm700, %v1442, 0
        %1515 = vmatprep.subr.bf16.mxu0 0
        %1516 = vmatpush1.bf16.msra.mxu0 %v1459
        %1517 = vmatprep.subr.bf16.mxu0 0
        %1518 = vmatpush1.bf16.msra.mxu0 %v1460
        %1519 = vmatprep.subr.bf16.mxu0 0
        %1520 = vmatpush1.bf16.msra.mxu0 %v1461
        %1521 = vmatprep.subr.bf16.mxu0 0
        %1522 = vmatpush1.bf16.msra.mxu0 %v1462
        %1523 = vmatprep.subr.bf16.mxu0 0
        %1524 = vmatpush1.bf16.msra.mxu0 0
        %1525 = vmatprep.subr.bf16.mxu0 0
        %1526 = vmatpush1.bf16.msra.mxu0 0
        %1527 = vmatprep.subr.bf16.mxu0 0
        %1528 = vmatpush1.bf16.msra.mxu0 0
        %1529 = vmatprep.subr.bf16.mxu0 0
        %1530 = vmatpush1.bf16.msra.mxu0 0
        %1531 = vmatprep.subr.bf16.mxu0 0
        %1532 = vmatpush1.bf16.msra.mxu0 0
        %1533 = vmatprep.subr.bf16.mxu0 0
        %1534 = vmatpush1.bf16.msra.mxu0 0
        %1535 = vmatprep.subr.bf16.mxu0 0
        %1536 = vmatpush1.bf16.msra.mxu0 0
        %1537 = vmatprep.subr.bf16.mxu0 0
        %1538 = vmatpush1.bf16.msra.mxu0 0
        %1539 = vmatprep.subr.bf16.mxu0 0
        %1540 = vmatpush1.bf16.msra.mxu0 0
        %1541 = vmatprep.subr.bf16.mxu0 0
        %1542 = vmatpush1.bf16.msra.mxu0 0
        %1543 = vmatprep.subr.bf16.mxu0 0
        %1544 = vmatpush1.bf16.msra.mxu0 0
        %1545 = vmatprep.subr.bf16.mxu0 0
        %1546 = vmatpush1.bf16.msra.mxu0 0
        %1547 = vmatprep.mubr.bf16.mxu0 0
        %1548 = vmatmul.mubr.bf16.gmra.mrb[0].mxu0 %v1468
        %v1549 = vpop.f32.mrb[0].mxu0
        %v1550 = vadd.f32 0.0, %v1549
        %v1551 = vpop.f32.mrb[0].mxu0
        %v1552 = vpop.f32.mrb[0].mxu0
        %v1553 = vadd.f32 0.0, %v1552
        %v1554 = vpop.f32.mrb[0].mxu0
        %1555 = vmatprep.mubr.bf16.mxu0 0
        %1556 = vmatmul.mubr.bf16.gmra.mrb[0].mxu0 %v1471
        %v1557 = vpop.f32.mrb[0].mxu0
        %v1558 = vadd.f32 0.0, %v1557
        %v1559 = vpop.f32.mrb[0].mxu0
        %v1560 = vpop.f32.mrb[0].mxu0
        %v1561 = vadd.f32 0.0, %v1560
        %v1562 = vpop.f32.mrb[0].mxu0
        %1563 = vmatprep.mubr.bf16.mxu0 0
        %1564 = vmatmul.mubr.bf16.gmra.mrb[0].mxu0 %v1474
        %v1565 = vpop.f32.mrb[0].mxu0
        %v1566 = vadd.f32 0.0, %v1565
        %v1567 = vpop.f32.mrb[0].mxu0
        %v1568 = vpop.f32.mrb[0].mxu0
        %v1569 = vadd.f32 0.0, %v1568
        %v1570 = vpop.f32.mrb[0].mxu0
        %1571 = vmatprep.mubr.bf16.mxu0 0
        %1572 = vmatmul.mubr.bf16.gmra.mrb[0].mxu0 %v1477
        %v1573 = vpop.f32.mrb[0].mxu0
        %v1574 = vadd.f32 0.0, %v1573
        %v1575 = vpop.f32.mrb[0].mxu0
        %v1576 = vpop.f32.mrb[0].mxu0
        %v1577 = vadd.f32 0.0, %v1576
        %v1578 = vpop.f32.mrb[0].mxu0
        %1579 = vmatprep.mubr.bf16.mxu0 0
        %1580 = vmatmul.mubr.bf16.gmra.mrb[0].mxu0 %v1480
        %v1581 = vpop.f32.mrb[0].mxu0
        %v1582 = vadd.f32 0.0, %v1581
        %v1583 = vpop.f32.mrb[0].mxu0
        %v1584 = vpop.f32.mrb[0].mxu0
        %v1585 = vadd.f32 0.0, %v1584
        %v1586 = vpop.f32.mrb[0].mxu0
        %1587 = vmatprep.mubr.bf16.mxu0 0
        %1588 = vmatmul.mubr.bf16.gmra.mrb[0].mxu0 %v1483
        %v1589 = vpop.f32.mrb[0].mxu0
        %v1590 = vadd.f32 0.0, %v1589
        %v1591 = vpop.f32.mrb[0].mxu0
        %v1592 = vpop.f32.mrb[0].mxu0
        %v1593 = vadd.f32 0.0, %v1592
        %v1594 = vpop.f32.mrb[0].mxu0
        %1595 = vmatprep.mubr.bf16.mxu0 0
        %1596 = vmatmul.mubr.bf16.gmra.mrb[0].mxu0 %v1486
        %v1597 = vpop.f32.mrb[0].mxu0
        %v1598 = vadd.f32 0.0, %v1597
        %v1599 = vpop.f32.mrb[0].mxu0
        %v1600 = vpop.f32.mrb[0].mxu0
        %v1601 = vadd.f32 0.0, %v1600
        %v1602 = vpop.f32.mrb[0].mxu0
        %1603 = vmatprep.mubr.bf16.mxu0 0
        %1604 = vmatmul.mubr.bf16.gmra.mrb[0].mxu0 %v1489
        %v1605 = vpop.f32.mrb[0].mxu0
        %v1606 = vadd.f32 0.0, %v1605
        %v1607 = vpop.f32.mrb[0].mxu0
        %v1608 = vpop.f32.mrb[0].mxu0
        %v1609 = vadd.f32 0.0, %v1608
        %v1610 = vpop.f32.mrb[0].mxu0
        %1611 = vmatprep.mubr.bf16.mxu0 0
        %1612 = vmatmul.mubr.bf16.gmra.mrb[0].mxu0 %v1492
        %v1613 = vpop.f32.mrb[0].mxu0
        %v1614 = vadd.f32 0.0, %v1613
        %v1615 = vpop.f32.mrb[0].mxu0
        %v1616 = vpop.f32.mrb[0].mxu0
        %v1617 = vadd.f32 0.0, %v1616
        %v1618 = vpop.f32.mrb[0].mxu0
        %1619 = vmatprep.mubr.bf16.mxu0 0
        %1620 = vmatmul.mubr.bf16.gmra.mrb[0].mxu0 %v1495
        %v1621 = vpop.f32.mrb[0].mxu0
        %v1622 = vadd.f32 0.0, %v1621
        %v1623 = vpop.f32.mrb[0].mxu0
        %v1624 = vpop.f32.mrb[0].mxu0
        %v1625 = vadd.f32 0.0, %v1624
        %v1626 = vpop.f32.mrb[0].mxu0
        %1627 = vmatprep.mubr.bf16.mxu0 0
        %1628 = vmatmul.mubr.bf16.gmra.mrb[0].mxu0 %v1498
        %v1629 = vpop.f32.mrb[0].mxu0
        %v1630 = vadd.f32 0.0, %v1629
        %v1631 = vpop.f32.mrb[0].mxu0
        %v1632 = vpop.f32.mrb[0].mxu0
        %v1633 = vadd.f32 0.0, %v1632
        %v1634 = vpop.f32.mrb[0].mxu0
        %1635 = vmatprep.mubr.bf16.mxu0 0
        %1636 = vmatmul.mubr.bf16.gmra.mrb[0].mxu0 %v1501
        %v1637 = vpop.f32.mrb[0].mxu0
        %v1638 = vadd.f32 0.0, %v1637
        %v1639 = vpop.f32.mrb[0].mxu0
        %v1640 = vpop.f32.mrb[0].mxu0
        %v1641 = vadd.f32 0.0, %v1640
        %v1642 = vpop.f32.mrb[0].mxu0
        %1643 = vmatprep.mubr.bf16.mxu0 0
        %1644 = vmatmul.mubr.bf16.gmra.mrb[0].mxu0 %v1504
        %v1645 = vpop.f32.mrb[0].mxu0
        %v1646 = vadd.f32 0.0, %v1645
        %v1647 = vpop.f32.mrb[0].mxu0
        %v1648 = vpop.f32.mrb[0].mxu0
        %v1649 = vadd.f32 0.0, %v1648
        %v1650 = vpop.f32.mrb[0].mxu0
        %1651 = vmatprep.mubr.bf16.mxu0 0
        %1652 = vmatmul.mubr.bf16.gmra.mrb[0].mxu0 %v1507
        %v1653 = vpop.f32.mrb[0].mxu0
        %v1654 = vadd.f32 0.0, %v1653
        %v1655 = vpop.f32.mrb[0].mxu0
        %v1656 = vpop.f32.mrb[0].mxu0
        %v1657 = vadd.f32 0.0, %v1656
        %v1658 = vpop.f32.mrb[0].mxu0
        %1659 = vmatprep.mubr.bf16.mxu0 0
        %1660 = vmatmul.mubr.bf16.gmra.mrb[0].mxu0 %v1510
        %v1661 = vpop.f32.mrb[0].mxu0
        %v1662 = vadd.f32 0.0, %v1661
        %v1663 = vpop.f32.mrb[0].mxu0
        %v1664 = vpop.f32.mrb[0].mxu0
        %v1665 = vadd.f32 0.0, %v1664
        %v1666 = vpop.f32.mrb[0].mxu0
        %1667 = vmatprep.mubr.bf16.mxu0 0
        %1668 = vmatmul.mubr.bf16.gmra.mrb[0].mxu0 %v1513
        %v1669 = vpop.f32.mrb[0].mxu0
        %v1670 = vadd.f32 0.0, %v1669
        %v1671 = vpop.f32.mrb[0].mxu0
        %v1672 = vpop.f32.mrb[0].mxu0
        %v1673 = vadd.f32 0.0, %v1672
        %v1674 = vpop.f32.mrb[0].mxu0
        %1675 = vdwg.mxu0
        %v1676 = vadd.f32 %v1097, %v1550
        %v1677 = vadd.f32 %v1100, %v1553
        %v1678 = vadd.f32 %v1105, %v1558
        %v1679 = vadd.f32 %v1108, %v1561
        %v1680 = vadd.f32 %v1113, %v1566
        %v1681 = vadd.f32 %v1116, %v1569
        %v1682 = vadd.f32 %v1121, %v1574
        %v1683 = vadd.f32 %v1124, %v1577
        %v1684 = vadd.f32 %v1129, %v1582
        %v1685 = vadd.f32 %v1132, %v1585
        %v1686 = vadd.f32 %v1137, %v1590
        %v1687 = vadd.f32 %v1140, %v1593
        %v1688 = vadd.f32 %v1145, %v1598
        %v1689 = vadd.f32 %v1148, %v1601
        %v1690 = vadd.f32 %v1153, %v1606
        %v1691 = vadd.f32 %v1156, %v1609
        %v1692 = vadd.f32 %v1161, %v1614
        %v1693 = vadd.f32 %v1164, %v1617
        %v1694 = vadd.f32 %v1169, %v1622
        %v1695 = vadd.f32 %v1172, %v1625
        %v1696 = vadd.f32 %v1177, %v1630
        %v1697 = vadd.f32 %v1180, %v1633
        %v1698 = vadd.f32 %v1185, %v1638
        %v1699 = vadd.f32 %v1188, %v1641
        %v1700 = vadd.f32 %v1193, %v1646
        %v1701 = vadd.f32 %v1196, %v1649
        %v1702 = vadd.f32 %v1201, %v1654
        %v1703 = vadd.f32 %v1204, %v1657
        %v1704 = vadd.f32 %v1209, %v1662
        %v1705 = vadd.f32 %v1212, %v1665
        %v1706 = vadd.f32 %v1217, %v1670
        %v1707 = vadd.f32 %v1220, %v1673
        %v1708 = vld [vmem:[%s2] sm:$0x1]
        %v1710 = vlaneseq
        %v1711 = vshrl.u32 %v1710, 7
        %v1712 = vsub.s32 0, %v1711
        %v1713 = vrot.slane %v1708, %v1712
        %v1715 = vadd.f32 %v1676, %v1713
        %v1716 = vadd.f32 %v1677, %v1713
        %v1717 = vadd.f32 %v1678, %v1713
        %v1718 = vadd.f32 %v1679, %v1713
        %v1719 = vadd.f32 %v1680, %v1713
        %v1720 = vadd.f32 %v1681, %v1713
        %v1721 = vadd.f32 %v1682, %v1713
        %v1722 = vadd.f32 %v1683, %v1713
        %v1723 = vadd.f32 %v1684, %v1713
        %v1724 = vadd.f32 %v1685, %v1713
        %v1725 = vadd.f32 %v1686, %v1713
        %v1726 = vadd.f32 %v1687, %v1713
        %v1727 = vadd.f32 %v1688, %v1713
        %v1728 = vadd.f32 %v1689, %v1713
        %v1729 = vadd.f32 %v1690, %v1713
        %v1730 = vadd.f32 %v1691, %v1713
        %v1731 = vadd.f32 %v1692, %v1713
        %v1732 = vadd.f32 %v1693, %v1713
        %v1733 = vadd.f32 %v1694, %v1713
        %v1734 = vadd.f32 %v1695, %v1713
        %v1735 = vadd.f32 %v1696, %v1713
        %v1736 = vadd.f32 %v1697, %v1713
        %v1737 = vadd.f32 %v1698, %v1713
        %v1738 = vadd.f32 %v1699, %v1713
        %v1739 = vadd.f32 %v1700, %v1713
        %v1740 = vadd.f32 %v1701, %v1713
        %v1741 = vadd.f32 %v1702, %v1713
        %v1742 = vadd.f32 %v1703, %v1713
        %v1743 = vadd.f32 %v1704, %v1713
        %v1744 = vadd.f32 %v1705, %v1713
        %v1745 = vadd.f32 %v1706, %v1713
        %v1746 = vadd.f32 %v1707, %v1713
        %v1747 = vpack.c.bf16 %v1716, %v1715
        %v1748 = vpack.c.bf16 %v1718, %v1717
        %v1749 = vpack.c.bf16 %v1720, %v1719
        %v1750 = vpack.c.bf16 %v1722, %v1721
        %v1751 = vpack.c.bf16 %v1724, %v1723
        %v1752 = vpack.c.bf16 %v1726, %v1725
        %v1753 = vpack.c.bf16 %v1728, %v1727
        %v1754 = vpack.c.bf16 %v1730, %v1729
        %v1755 = vpack.c.bf16 %v1732, %v1731
        %v1756 = vpack.c.bf16 %v1734, %v1733
        %v1757 = vpack.c.bf16 %v1736, %v1735
        %v1758 = vpack.c.bf16 %v1738, %v1737
        %v1759 = vpack.c.bf16 %v1740, %v1739
        %v1760 = vpack.c.bf16 %v1742, %v1741
        %v1761 = vpack.c.bf16 %v1744, %v1743
        %v1762 = vpack.c.bf16 %v1746, %v1745
        %v1779 = vunpack.c.l.b16 %v1747
        %v1780 = vunpack.c.h.b16 %v1747
        %v1781 = vunpack.c.l.b16 %v1748
        %v1782 = vunpack.c.h.b16 %v1748
        %v1783 = vunpack.c.l.b16 %v1749
        %v1784 = vunpack.c.h.b16 %v1749
        %v1785 = vunpack.c.l.b16 %v1750
        %v1786 = vunpack.c.h.b16 %v1750
        %v1787 = vunpack.c.l.b16 %v1751
        %v1788 = vunpack.c.h.b16 %v1751
        %v1789 = vunpack.c.l.b16 %v1752
        %v1790 = vunpack.c.h.b16 %v1752
        %v1791 = vunpack.c.l.b16 %v1753
        %v1792 = vunpack.c.h.b16 %v1753
        %v1793 = vunpack.c.l.b16 %v1754
        %v1794 = vunpack.c.h.b16 %v1754
        %v1795 = vunpack.c.l.b16 %v1755
        %v1796 = vunpack.c.h.b16 %v1755
        %v1797 = vunpack.c.l.b16 %v1756
        %v1798 = vunpack.c.h.b16 %v1756
        %v1799 = vunpack.c.l.b16 %v1757
        %v1800 = vunpack.c.h.b16 %v1757
        %v1801 = vunpack.c.l.b16 %v1758
        %v1802 = vunpack.c.h.b16 %v1758
        %v1803 = vunpack.c.l.b16 %v1759
        %v1804 = vunpack.c.h.b16 %v1759
        %v1805 = vunpack.c.l.b16 %v1760
        %v1806 = vunpack.c.h.b16 %v1760
        %v1807 = vunpack.c.l.b16 %v1761
        %v1808 = vunpack.c.h.b16 %v1761
        %v1809 = vunpack.c.l.b16 %v1762
        %v1810 = vunpack.c.h.b16 %v1762
        %v1811 = vpack.c.b16 %v1779, %v1779
        %v1812 = vpack.c.b16 %v1780, %v1780
        %v1813 = vpack.c.b16 %v1781, %v1781
        %v1814 = vpack.c.b16 %v1782, %v1782
        %v1815 = vpack.c.b16 %v1783, %v1783
        %v1816 = vpack.c.b16 %v1784, %v1784
        %v1817 = vpack.c.b16 %v1785, %v1785
        %v1818 = vpack.c.b16 %v1786, %v1786
        %v1819 = vpack.c.b16 %v1787, %v1787
        %v1820 = vpack.c.b16 %v1788, %v1788
        %v1821 = vpack.c.b16 %v1789, %v1789
        %v1822 = vpack.c.b16 %v1790, %v1790
        %v1823 = vpack.c.b16 %v1791, %v1791
        %v1824 = vpack.c.b16 %v1792, %v1792
        %v1825 = vpack.c.b16 %v1793, %v1793
        %v1826 = vpack.c.b16 %v1794, %v1794
        %v1827 = vpack.c.b16 %v1795, %v1795
        %v1828 = vpack.c.b16 %v1796, %v1796
        %v1829 = vpack.c.b16 %v1797, %v1797
        %v1830 = vpack.c.b16 %v1798, %v1798
        %v1831 = vpack.c.b16 %v1799, %v1799
        %v1832 = vpack.c.b16 %v1800, %v1800
        %v1833 = vpack.c.b16 %v1801, %v1801
        %v1834 = vpack.c.b16 %v1802, %v1802
        %v1835 = vpack.c.b16 %v1803, %v1803
        %v1836 = vpack.c.b16 %v1804, %v1804
        %v1837 = vpack.c.b16 %v1805, %v1805
        %v1838 = vpack.c.b16 %v1806, %v1806
        %v1839 = vpack.c.b16 %v1807, %v1807
        %v1840 = vpack.c.b16 %v1808, %v1808
        %v1841 = vpack.c.b16 %v1809, %v1809
        %v1842 = vpack.c.b16 %v1810, %v1810
        %1875 = vst [vmem:[%s166] sm:$0xf] %v1811
        %1876 = vst [vmem:[%s166 + $0x4] sm:$0xf] %v1812
        %1877 = vst [vmem:[%s166 + $0x8] sm:$0xf] %v1813
        %1878 = vst [vmem:[%s166 + $0xc] sm:$0xf] %v1814
        %1879 = vst [vmem:[%s166 + $0x10] sm:$0xf] %v1815
        %1880 = vst [vmem:[%s166 + $0x14] sm:$0xf] %v1816
        %1881 = vst [vmem:[%s166 + $0x18] sm:$0xf] %v1817
        %1882 = vst [vmem:[%s166 + $0x1c] sm:$0xf] %v1818
        %1883 = vst [vmem:[%s166 + $0x20] sm:$0xf] %v1819
        %1884 = vst [vmem:[%s166 + $0x24] sm:$0xf] %v1820
        %1885 = vst [vmem:[%s166 + $0x28] sm:$0xf] %v1821
        %1886 = vst [vmem:[%s166 + $0x2c] sm:$0xf] %v1822
        %1887 = vst [vmem:[%s166 + $0x30] sm:$0xf] %v1823
        %1888 = vst [vmem:[%s166 + $0x34] sm:$0xf] %v1824
        %1889 = vst [vmem:[%s166 + $0x38] sm:$0xf] %v1825
        %1890 = vst [vmem:[%s166 + $0x3c] sm:$0xf] %v1826
        %1891 = vst [vmem:[%s166 + $0x40] sm:$0xf] %v1827
        %1892 = vst [vmem:[%s166 + $0x44] sm:$0xf] %v1828
        %1893 = vst [vmem:[%s166 + $0x48] sm:$0xf] %v1829
        %1894 = vst [vmem:[%s166 + $0x4c] sm:$0xf] %v1830
        %1895 = vst [vmem:[%s166 + $0x50] sm:$0xf] %v1831
        %1896 = vst [vmem:[%s166 + $0x54] sm:$0xf] %v1832
        %1897 = vst [vmem:[%s166 + $0x58] sm:$0xf] %v1833
        %1898 = vst [vmem:[%s166 + $0x5c] sm:$0xf] %v1834
        %1899 = vst [vmem:[%s166 + $0x60] sm:$0xf] %v1835
        %1900 = vst [vmem:[%s166 + $0x64] sm:$0xf] %v1836
        %1901 = vst [vmem:[%s166 + $0x68] sm:$0xf] %v1837
        %1902 = vst [vmem:[%s166 + $0x6c] sm:$0xf] %v1838
        %1903 = vst [vmem:[%s166 + $0x70] sm:$0xf] %v1839
        %1904 = vst [vmem:[%s166 + $0x74] sm:$0xf] %v1840
        %1905 = vst [vmem:[%s166 + $0x78] sm:$0xf] %v1841
        %1906 = vst [vmem:[%s166 + $0x7c] sm:$0xf] %v1842
        %s1907 = sand.u32 %s93, 1
        %s1908 = scalar_lea.sflag [#allocation3], %s1907
        %s1909 = sand.u32 %s93, 1
        %s1910 = smul.addr %s1909, 128
        %s1911 = scalar_lea.vmem [#allocation2], %s1910
        // Predicated region
        $region33: #{tpu_custom_call.1} parent=31 // pred_check
          %p1912 = pneg %p103
        $region34: #{tpu_custom_call.1} parent=31 // pred_check_branch
          %1914 = sbr.rel (%p1912) target = $region36
        $region35: #{tpu_custom_call.1} parent=31 // pred_region
          %s1915 = smul.u32 16, %s17
          %s1917 = ssub.s32 2048, 2048
          %1918 = vsyncadd %s1908, %s1917
          %s1919 = smul.addr %s1915, 2
          %s1920 = smul.addr %s1919, 64
          %s1921 = scalar_lea.hbm %s3, %s1920
          %s1922 = sshll.u32 %s1911, 4
          %s1923 = int_to_ptr.vmem [resolvable:$true] %s1922
          %1928 = dma.vmem_to_hbm [thread:$0]  %s1923, 2048, %s1921, %s1908, 64, 64, 4
        $region36: #{tpu_custom_call.1} parent=31 // pred_fallthru
          _
      $region32: #{tpu_custom_call.1} parent=5 // pred_fallthru
        _
      %p1929 = scmp.le.s32.totalorder 2, %s12
      // Predicated region
      $region37: #{tpu_custom_call.1} parent=5 // pred_check
        %p1930 = pneg %p1929
      $region38: #{tpu_custom_call.1} parent=5 // pred_check_branch
        %1932 = sbr.rel (%p1930) target = $region40
      $region39: #{tpu_custom_call.1} parent=5 // pred_region
        %s1933 = ssub.s32 %s12, 2
        // Predicated region
        $region41: #{tpu_custom_call.1} parent=39 // pred_check
          %p1934 = pneg %p109
        $region42: #{tpu_custom_call.1} parent=39 // pred_check_branch
          %1936 = sbr.rel (%p1934) target = $region44
        $region43: #{tpu_custom_call.1} parent=39 // pred_region
          %s1937 = sand.u32 %s94, 1
          %s1938 = scalar_lea.sflag [#allocation3], %s1937
          %s1939 = sand.u32 %s94, 1
          %s1940 = smul.addr %s1939, 128
          %s1941 = scalar_lea.vmem [#allocation2], %s1940
          %1942 = dma.done %s1938, 2048
        $region44: #{tpu_custom_call.1} parent=39 // pred_fallthru
          _
      $region40: #{tpu_custom_call.1} parent=5 // pred_fallthru
        _
    $region6: #{tpu_custom_call.1} parent=1 // loop_footer
      %s16 = sadd.s32 1, %s12
    $region7: #{tpu_custom_call.1} parent=1 // loop_footer_branch
      %11 = sbr.rel target = $region3
    $region8: #{tpu_custom_call.1} parent=1 // loop_exit
      _
    %1943 = vsyncpa [#allocation3], 1
    %s1944 = scalar_lea.sflag [#allocation3], 1
    %1945 = vsyncpa %s1944, 1

</llo_original>
